<compile_context>
chip_gen: v7x
topology: tpu7x:2x2x1
jax: 0.10.0
libtpu: 0.0.40
codegen_flags: <defaults>
</compile_context>

<pallas_src>
import math

import jax
import jax.numpy as jnp
import numpy as np
from jax import lax
from jax.experimental import pallas as pl
from jax.experimental.pallas import tpu as pltpu

# ----------------------- small synthetic config -----------------------
B = 2                       # batch
S = 8                       # seq len (q_len == kv_seq_len, no cache)
NUM_HEADS = 2
NUM_KV_HEADS = 1
HEAD_DIM = 128
H = NUM_HEADS * HEAD_DIM    # hidden_size = 256
N_REP = NUM_HEADS // NUM_KV_HEADS
ROPE_BASE = 10000.0
SCALE = 1.0 / math.sqrt(HEAD_DIM)
BS = B * S
D2 = HEAD_DIM // 2


# ----------------------------- kernel ---------------------------------
def _rope(t, cos, sin_signed):
    # x*cos + rotate_half(x)*sin  ==  x*cos + roll(x, D/2)*sin_signed
    # with sin_signed = cat(-sin_half, +sin_half) folded host-side.
    # roll by D/2 is direction-agnostic, so pltpu.roll matches jnp.roll here.
    return t * cos + pltpu.roll(t, shift=D2, axis=1) * sin_signed


def attention_kernel(x_ref, mask_ref, cos_ref, sin_ref,
                     wq_ref, wk_ref, wv_ref, wo_ref, o_ref):
    x = x_ref[...]                                              # (S, H) bf16

    # q/k/v projections: bf16 operands, f32 accumulation on the MXU.
    q = jnp.dot(x, wq_ref[...], preferred_element_type=jnp.float32)   # (S, NH*D) f32
    k = jnp.dot(x, wk_ref[...], preferred_element_type=jnp.float32)   # (S, NKV*D) f32
    v = jnp.dot(x, wv_ref[...],
                preferred_element_type=jnp.float32).astype(jnp.bfloat16)  # (S, NKV*D) bf16

    cos = cos_ref[...]                                          # (S, D) f32
    sin = sin_ref[...]                                          # (S, D) f32, sign-folded
    cos_q = cos * SCALE                                         # fold softmax scale (q side)
    sin_q = sin * SCALE
    cos_qs = jnp.concatenate([cos_q] * N_REP, axis=0)           # (N_REP*S, D)
    sin_qs = jnp.concatenate([sin_q] * N_REP, axis=0)

    mask = mask_ref[...]                                        # (S, S) additive f32
    mask_rep = jnp.concatenate([mask] * N_REP, axis=0)          # (N_REP*S, S)

    dn = (((1,), (1,)), ((), ()))                               # contract last dims: q . k^T

    pieces = []                                                 # per-head (S, D) outputs
    for kv in range(NUM_KV_HEADS):
        # K RoPE once per KV head (f32 math), then bf16 for the MXU.
        kh = _rope(k[:, kv * HEAD_DIM:(kv + 1) * HEAD_DIM],
                   cos, sin).astype(jnp.bfloat16)               # (S, D) bf16
        vh = v[:, kv * HEAD_DIM:(kv + 1) * HEAD_DIM]            # (S, D) bf16

        # Merge the N_REP query heads sharing this KV head into one block:
        # one scores matmul, one softmax, one P.V matmul (M = N_REP*S = 16).
        h0 = kv * N_REP
        q_grp = jnp.concatenate(
            [q[:, (h0 + r) * HEAD_DIM:(h0 + r + 1) * HEAD_DIM]
             for r in range(N_REP)], axis=0)                    # (N_REP*S, D) f32
        q_rope = _rope(q_grp, cos_qs, sin_qs).astype(jnp.bfloat16)

        scores = lax.dot_general(q_rope, kh, dn,
                                 preferred_element_type=jnp.float32)  # (N_REP*S, S)
        scores = scores + mask_rep
        scores = scores - jnp.max(scores, axis=-1, keepdims=True)
        p = jnp.exp(scores)                                     # f32 softmax numerators
        p = p * pl.reciprocal(jnp.sum(p, axis=-1, keepdims=True), approx=True)

        head_out = jnp.dot(p.astype(jnp.bfloat16), vh,
                           preferred_element_type=jnp.float32)  # (N_REP*S, D) f32
        for r in range(N_REP):
            pieces.append(head_out[r * S:(r + 1) * S])          # head h0 + r

    # Lane-aligned bf16 output slab (concat at 128-lane boundaries is layout
    # only), then a single deep-K o_proj matmul and one full-slab store.
    slab = jnp.concatenate(pieces, axis=1).astype(jnp.bfloat16)  # (S, NH*D)
    o_ref[...] = jnp.dot(slab, wo_ref[...],
                         preferred_element_type=jnp.float32)     # (S, H) f32


# --------------------------- wrapper -----------------------------------
def llama_attention(hidden_states, attention_mask, params):
    """hidden_states (B,S,H) f32, attention_mask (B,1,S,S) additive f32."""
    x2d = hidden_states.astype(jnp.bfloat16).reshape(BS, H)
    mask = attention_mask.reshape(B, S, S)

    grid_spec = pltpu.PrefetchScalarGridSpec(
        num_scalar_prefetch=0,
        grid=(B,),                                   # one step per batch (parallel -> both TCs on v7x)
        in_specs=[
            pl.BlockSpec((S, H), lambda b: (b, 0)),                  # hidden (bf16)
            pl.BlockSpec((None, S, S), lambda b: (b, 0, 0)),         # additive mask (f32)
            pl.BlockSpec((S, HEAD_DIM), lambda b: (0, 0)),           # cos table (shared)
            pl.BlockSpec((S, HEAD_DIM), lambda b: (0, 0)),           # sin table (sign-folded)
            pl.BlockSpec((H, NUM_HEADS * HEAD_DIM), lambda b: (0, 0)),      # Wq^T bf16
            pl.BlockSpec((H, NUM_KV_HEADS * HEAD_DIM), lambda b: (0, 0)),   # Wk^T bf16
            pl.BlockSpec((H, NUM_KV_HEADS * HEAD_DIM), lambda b: (0, 0)),   # Wv^T bf16
            pl.BlockSpec((NUM_HEADS * HEAD_DIM, H), lambda b: (0, 0)),      # Wo^T bf16
        ],
        out_specs=pl.BlockSpec((S, H), lambda b: (b, 0)),
    )

    out2d = pl.pallas_call(
        attention_kernel,
        out_shape=jax.ShapeDtypeStruct((BS, H), jnp.float32),
        grid_spec=grid_spec,
        compiler_params=pltpu.CompilerParams(
            dimension_semantics=("parallel",)),
    )(x2d, mask, params["cos"], params["sin_signed"],
      params["wq_bf16"], params["wk_bf16"], params["wv_bf16"], params["wo_bf16"])
    return out2d.reshape(B, S, H)


# ------------------------ pure-JAX reference ---------------------------
def rotate_half(x):
    x1 = x[..., : x.shape[-1] // 2]
    x2 = x[..., x.shape[-1] // 2:]
    return jnp.concatenate((-x2, x1), axis=-1)


def ref_attention(hidden_states, attention_mask, wq, wk, wv, wo,
                  cos_full, sin_full):
    # Same mixed precision as the kernel (bf16 matmul operands, f32 accumulate,
    # f32 RoPE / softmax elementwise math).
    xb = hidden_states.astype(jnp.bfloat16)
    wqb, wkb, wvb, wob = (w.astype(jnp.bfloat16) for w in (wq, wk, wv, wo))
    q = jnp.dot(xb, wqb, preferred_element_type=jnp.float32)
    k = jnp.dot(xb, wkb, preferred_element_type=jnp.float32)
    v = jnp.dot(xb, wvb, preferred_element_type=jnp.float32)
    q = q.reshape(B, S, NUM_HEADS, HEAD_DIM).transpose(0, 2, 1, 3)
    k = k.reshape(B, S, NUM_KV_HEADS, HEAD_DIM).transpose(0, 2, 1, 3)
    v = v.reshape(B, S, NUM_KV_HEADS, HEAD_DIM).transpose(0, 2, 1, 3)

    cos = cos_full[None, None]                     # (1,1,S,D), positions 0..S-1
    sin = sin_full[None, None]
    q = q * cos + rotate_half(q) * sin
    k = k * cos + rotate_half(k) * sin
    k = jnp.repeat(k, N_REP, axis=1)
    v = jnp.repeat(v, N_REP, axis=1)

    w_ = jnp.einsum("bhqd,bhkd->bhqk",
                    q.astype(jnp.bfloat16), k.astype(jnp.bfloat16),
                    preferred_element_type=jnp.float32) * SCALE
    w_ = w_ + attention_mask
    w_ = jax.nn.softmax(w_, axis=-1)
    o = jnp.einsum("bhqk,bhkd->bhqd",
                   w_.astype(jnp.bfloat16), v.astype(jnp.bfloat16),
                   preferred_element_type=jnp.float32)
    o = o.transpose(0, 2, 1, 3).reshape(B, S, H)
    return jnp.dot(o.astype(jnp.bfloat16), wob, preferred_element_type=jnp.float32)


# ------------------------------- main -----------------------------------
if __name__ == "__main__":
    key = jax.random.PRNGKey(0)
    ks = jax.random.split(key, 6)

    def rnd(k, shape, scale=0.02):
        return (scale * jax.random.normal(k, shape)).astype(jnp.float32)

    hidden_states = jax.random.normal(ks[0], (B, S, H), dtype=jnp.float32)

    # Causal additive attention mask (B, 1, S, S): 0 on/below diag, -1e9 above.
    row = jnp.arange(S)[:, None]
    col = jnp.arange(S)[None, :]
    causal = jnp.where(col <= row, 0.0, -1e9).astype(jnp.float32)
    attention_mask = jnp.broadcast_to(causal, (B, 1, S, S))

    # Rotary tables for positions 0..S-1 (no KV cache, position_ids=None path).
    inv_freq = 1.0 / (ROPE_BASE ** (jnp.arange(0, HEAD_DIM, 2, dtype=jnp.float32)
                                    / HEAD_DIM))
    freqs = jnp.arange(S, dtype=jnp.float32)[:, None] * inv_freq[None, :]
    emb = jnp.concatenate([freqs, freqs], axis=-1)           # (S, HEAD_DIM)
    cos_full = jnp.cos(emb)
    sin_full = jnp.sin(emb)
    # Fold rotate_half's +/-1 pattern into the sin table (kernel uses roll).
    sin_signed = jnp.concatenate([-sin_full[:, :D2], sin_full[:, D2:]], axis=-1)

    wq = rnd(ks[1], (H, NUM_HEADS * HEAD_DIM))
    wk = rnd(ks[2], (H, NUM_KV_HEADS * HEAD_DIM))
    wv = rnd(ks[3], (H, NUM_KV_HEADS * HEAD_DIM))
    wo = rnd(ks[4], (NUM_HEADS * HEAD_DIM, H))

    params = {
        "wq_bf16": wq.astype(jnp.bfloat16),
        "wk_bf16": wk.astype(jnp.bfloat16),
        "wv_bf16": wv.astype(jnp.bfloat16),
        "wo_bf16": wo.astype(jnp.bfloat16),
        "cos": cos_full.astype(jnp.float32),         # (S, D), shared across batch
        "sin_signed": sin_signed.astype(jnp.float32),
    }

    out = llama_attention(hidden_states, attention_mask, params)
    out = jax.block_until_ready(out)

    ref = ref_attention(hidden_states, attention_mask, wq, wk, wv, wo,
                        cos_full, sin_full)
    ref = jax.block_until_ready(ref)

    # TODO(synk): attn_weights / past_key_value outputs of the PyTorch forward
    # are None on this path; past_key_position_ids is jnp.arange(S)[None] and is
    # produced host-side, not by the kernel.
    np.testing.assert_allclose(np.asarray(out, dtype=np.float32),
                               np.asarray(ref, dtype=np.float32),
                               rtol=2e-2, atol=2e-3)
    print("KERNEL_OK")
</pallas_src>

<mosaic_0001>
module attributes {stable_mosaic.version = 11 : i64} {
  func.func @attention_kernel(%arg0: i32, %arg1: memref<8x256xbf16, #tpu.memory_space<vmem>>, %arg2: memref<1x8x8xf32, #tpu.memory_space<vmem>>, %arg3: memref<8x128xf32, #tpu.memory_space<vmem>>, %arg4: memref<8x128xf32, #tpu.memory_space<vmem>>, %arg5: memref<256x256xbf16, #tpu.memory_space<vmem>>, %arg6: memref<256x128xbf16, #tpu.memory_space<vmem>>, %arg7: memref<256x128xbf16, #tpu.memory_space<vmem>>, %arg8: memref<256x256xbf16, #tpu.memory_space<vmem>>, %arg9: memref<8x256xf32, #tpu.memory_space<vmem>>) attributes {dimension_semantics = [#tpu.dimension_semantics<parallel>], iteration_bounds = array<i64: 2>, scalar_prefetch = 0 : i64, scratch_operands = 0 : i64, tpu.core_type = #tpu.core_type<tc>, window_params = [{transform_indices = @transform_0, window_bounds = array<i64: 8, 256>}, {transform_indices = @transform_1, window_bounds = array<i64: 1, 8, 8>}, {pipeline_mode = #tpu.pipeline_mode<synchronous>, transform_indices = @transform_2, window_bounds = array<i64: 8, 128>}, {pipeline_mode = #tpu.pipeline_mode<synchronous>, transform_indices = @transform_3, window_bounds = array<i64: 8, 128>}, {pipeline_mode = #tpu.pipeline_mode<synchronous>, transform_indices = @transform_4, window_bounds = array<i64: 256, 256>}, {pipeline_mode = #tpu.pipeline_mode<synchronous>, transform_indices = @transform_5, window_bounds = array<i64: 256, 128>}, {pipeline_mode = #tpu.pipeline_mode<synchronous>, transform_indices = @transform_6, window_bounds = array<i64: 256, 128>}, {pipeline_mode = #tpu.pipeline_mode<synchronous>, transform_indices = @transform_7, window_bounds = array<i64: 256, 256>}, {transform_indices = @transform_8, window_bounds = array<i64: 8, 256>}]} {
    %c0 = arith.constant 0 : index
    %c0_0 = arith.constant 0 : index
    %0 = vector.load %arg1[%c0, %c0_0] : memref<8x256xbf16, #tpu.memory_space<vmem>>, vector<8x256xbf16>
    %c0_1 = arith.constant 0 : index
    %c0_2 = arith.constant 0 : index
    %1 = vector.load %arg5[%c0_1, %c0_2] : memref<256x256xbf16, #tpu.memory_space<vmem>>, vector<256x256xbf16>
    %cst = arith.constant dense<0.000000e+00> : vector<8x256xf32>
    %2 = tpu.matmul %0, %1, %cst {dimension_numbers = #tpu.dot_dimension_numbers<[1], [0], [0], [1], [0, 0, 1, 1], [], []>} : vector<8x256xbf16>, vector<256x256xbf16>, vector<8x256xf32> -> vector<8x256xf32>
    %c0_3 = arith.constant 0 : index
    %c0_4 = arith.constant 0 : index
    %3 = vector.load %arg6[%c0_3, %c0_4] : memref<256x128xbf16, #tpu.memory_space<vmem>>, vector<256x128xbf16>
    %cst_5 = arith.constant dense<0.000000e+00> : vector<8x128xf32>
    %4 = tpu.matmul %0, %3, %cst_5 {dimension_numbers = #tpu.dot_dimension_numbers<[1], [0], [0], [1], [0, 0, 1, 1], [], []>} : vector<8x256xbf16>, vector<256x128xbf16>, vector<8x128xf32> -> vector<8x128xf32>
    %c0_6 = arith.constant 0 : index
    %c0_7 = arith.constant 0 : index
    %5 = vector.load %arg7[%c0_6, %c0_7] : memref<256x128xbf16, #tpu.memory_space<vmem>>, vector<256x128xbf16>
    %cst_8 = arith.constant dense<0.000000e+00> : vector<8x128xf32>
    %6 = tpu.matmul %0, %5, %cst_8 {dimension_numbers = #tpu.dot_dimension_numbers<[1], [0], [0], [1], [0, 0, 1, 1], [], []>} : vector<8x256xbf16>, vector<256x128xbf16>, vector<8x128xf32> -> vector<8x128xf32>
    %7 = arith.truncf %6 : vector<8x128xf32> to vector<8x128xbf16>
    %c0_9 = arith.constant 0 : index
    %c0_10 = arith.constant 0 : index
    %8 = vector.load %arg3[%c0_9, %c0_10] : memref<8x128xf32, #tpu.memory_space<vmem>>, vector<8x128xf32>
    %c0_11 = arith.constant 0 : index
    %c0_12 = arith.constant 0 : index
    %9 = vector.load %arg4[%c0_11, %c0_12] : memref<8x128xf32, #tpu.memory_space<vmem>>, vector<8x128xf32>
    %cst_13 = arith.constant 0.0883883461 : f32
    %10 = vector.broadcast %cst_13 : f32 to vector<8x128xf32>
    %11 = arith.mulf %8, %10 : vector<8x128xf32>
    %cst_14 = arith.constant 0.0883883461 : f32
    %12 = vector.broadcast %cst_14 : f32 to vector<8x128xf32>
    %13 = arith.mulf %9, %12 : vector<8x128xf32>
    %14 = tpu.concatenate %11, %11 in 0 : vector<8x128xf32>, vector<8x128xf32> -> vector<16x128xf32>
    %15 = tpu.concatenate %13, %13 in 0 : vector<8x128xf32>, vector<8x128xf32> -> vector<16x128xf32>
    %c0_15 = arith.constant 0 : index
    %c0_16 = arith.constant 0 : index
    %c0_17 = arith.constant 0 : index
    %16 = vector.load %arg2[%c0_15, %c0_16, %c0_17] : memref<1x8x8xf32, #tpu.memory_space<vmem>>, vector<1x8x8xf32>
    %17 = vector.shape_cast %16 : vector<1x8x8xf32> to vector<8x8xf32>
    %18 = tpu.concatenate %17, %17 in 0 : vector<8x8xf32>, vector<8x8xf32> -> vector<16x8xf32>
    %19 = arith.mulf %4, %8 : vector<8x128xf32>
    %c64_i32 = arith.constant 64 : i32
    %20 = tpu.dynamic_rotate %4 by %c64_i32 dim 1 : vector<8x128xf32>, i32 -> vector<8x128xf32>
    %21 = arith.mulf %20, %9 : vector<8x128xf32>
    %22 = arith.addf %19, %21 : vector<8x128xf32>
    %23 = arith.truncf %22 : vector<8x128xf32> to vector<8x128xbf16>
    %24 = vector.extract_strided_slice %2 {offsets = [0, 0], sizes = [8, 128], strides = [1, 1]} : vector<8x256xf32> to vector<8x128xf32>
    %25 = vector.extract_strided_slice %2 {offsets = [0, 128], sizes = [8, 128], strides = [1, 1]} : vector<8x256xf32> to vector<8x128xf32>
    %26 = tpu.concatenate %24, %25 in 0 : vector<8x128xf32>, vector<8x128xf32> -> vector<16x128xf32>
    %27 = arith.mulf %26, %14 : vector<16x128xf32>
    %c64_i32_18 = arith.constant 64 : i32
    %28 = tpu.dynamic_rotate %26 by %c64_i32_18 dim 1 : vector<16x128xf32>, i32 -> vector<16x128xf32>
    %29 = arith.mulf %28, %15 : vector<16x128xf32>
    %30 = arith.addf %27, %29 : vector<16x128xf32>
    %31 = arith.truncf %30 : vector<16x128xf32> to vector<16x128xbf16>
    %cst_19 = arith.constant dense<0.000000e+00> : vector<16x8xf32>
    %32 = tpu.matmul %31, %23, %cst_19 {dimension_numbers = #tpu.dot_dimension_numbers<[1], [1], [0], [0], [0, 0, 1, 0], [], []>} : vector<16x128xbf16>, vector<8x128xbf16>, vector<16x8xf32> -> vector<16x8xf32>
    %33 = arith.addf %32, %18 : vector<16x8xf32>
    %cst_20 = arith.constant dense<0xFF800000> : vector<16xf32>
    %34 = vector.multi_reduction <maximumf>, %33, %cst_20 [1] : vector<16x8xf32> to vector<16xf32>
    %35 = vector.shape_cast %34 : vector<16xf32> to vector<16x1xf32>
    %36 = vector.broadcast %35 : vector<16x1xf32> to vector<16x8xf32>
    %37 = arith.subf %33, %36 : vector<16x8xf32>
    %38 = math.exp %37 : vector<16x8xf32>
    %cst_21 = arith.constant dense<0.000000e+00> : vector<16xf32>
    %39 = vector.multi_reduction <add>, %38, %cst_21 [1] : vector<16x8xf32> to vector<16xf32>
    %40 = vector.shape_cast %39 : vector<16xf32> to vector<16x1xf32>
    %41 = tpu.reciprocal %40 {approx = true} : vector<16x1xf32> -> vector<16x1xf32>
    %42 = vector.broadcast %41 : vector<16x1xf32> to vector<16x8xf32>
    %43 = arith.mulf %38, %42 : vector<16x8xf32>
    %44 = arith.truncf %43 : vector<16x8xf32> to vector<16x8xbf16>
    %cst_22 = arith.constant dense<0.000000e+00> : vector<16x128xf32>
    %45 = tpu.matmul %44, %7, %cst_22 {dimension_numbers = #tpu.dot_dimension_numbers<[1], [0], [0], [1], [0, 0, 1, 1], [], []>} : vector<16x8xbf16>, vector<8x128xbf16>, vector<16x128xf32> -> vector<16x128xf32>
    %46 = vector.extract_strided_slice %45 {offsets = [0, 0], sizes = [8, 128], strides = [1, 1]} : vector<16x128xf32> to vector<8x128xf32>
    %47 = vector.extract_strided_slice %45 {offsets = [8, 0], sizes = [8, 128], strides = [1, 1]} : vector<16x128xf32> to vector<8x128xf32>
    %48 = tpu.concatenate %46, %47 in 1 : vector<8x128xf32>, vector<8x128xf32> -> vector<8x256xf32>
    %49 = arith.truncf %48 : vector<8x256xf32> to vector<8x256xbf16>
    %c0_23 = arith.constant 0 : index
    %c0_24 = arith.constant 0 : index
    %50 = vector.load %arg8[%c0_23, %c0_24] : memref<256x256xbf16, #tpu.memory_space<vmem>>, vector<256x256xbf16>
    %cst_25 = arith.constant dense<0.000000e+00> : vector<8x256xf32>
    %51 = tpu.matmul %49, %50, %cst_25 {dimension_numbers = #tpu.dot_dimension_numbers<[1], [0], [0], [1], [0, 0, 1, 1], [], []>} : vector<8x256xbf16>, vector<256x256xbf16>, vector<8x256xf32> -> vector<8x256xf32>
    %c0_26 = arith.constant 0 : index
    %c0_27 = arith.constant 0 : index
    %52 = vector.load %arg9[%c0_26, %c0_27] : memref<8x256xf32, #tpu.memory_space<vmem>>, vector<8x256xf32>
    tpu.vector_store %arg9[%c0_26, %c0_27], %51 {strides = array<i32>} : memref<8x256xf32, #tpu.memory_space<vmem>>, vector<8x256xf32>,
    return
  }
  func.func @transform_0(%arg0: i32) -> (i32, i32) {
    %c0_i32 = arith.constant 0 : i32
    %c0_i32_0 = arith.constant 0 : i32
    return %arg0, %c0_i32 : i32, i32
  }
  func.func @transform_1(%arg0: i32) -> (i32, i32, i32) {
    %c0_i32 = arith.constant 0 : i32
    %c0_i32_0 = arith.constant 0 : i32
    %c0_i32_1 = arith.constant 0 : i32
    return %arg0, %c0_i32, %c0_i32_0 : i32, i32, i32
  }
  func.func @transform_2(%arg0: i32) -> (i32, i32) {
    %c0_i32 = arith.constant 0 : i32
    %c0_i32_0 = arith.constant 0 : i32
    %c0_i32_1 = arith.constant 0 : i32
    return %c0_i32, %c0_i32_0 : i32, i32
  }
  func.func @transform_3(%arg0: i32) -> (i32, i32) {
    %c0_i32 = arith.constant 0 : i32
    %c0_i32_0 = arith.constant 0 : i32
    %c0_i32_1 = arith.constant 0 : i32
    return %c0_i32, %c0_i32_0 : i32, i32
  }
  func.func @transform_4(%arg0: i32) -> (i32, i32) {
    %c0_i32 = arith.constant 0 : i32
    %c0_i32_0 = arith.constant 0 : i32
    %c0_i32_1 = arith.constant 0 : i32
    return %c0_i32, %c0_i32_0 : i32, i32
  }
  func.func @transform_5(%arg0: i32) -> (i32, i32) {
    %c0_i32 = arith.constant 0 : i32
    %c0_i32_0 = arith.constant 0 : i32
    %c0_i32_1 = arith.constant 0 : i32
    return %c0_i32, %c0_i32_0 : i32, i32
  }
  func.func @transform_6(%arg0: i32) -> (i32, i32) {
    %c0_i32 = arith.constant 0 : i32
    %c0_i32_0 = arith.constant 0 : i32
    %c0_i32_1 = arith.constant 0 : i32
    return %c0_i32, %c0_i32_0 : i32, i32
  }
  func.func @transform_7(%arg0: i32) -> (i32, i32) {
    %c0_i32 = arith.constant 0 : i32
    %c0_i32_0 = arith.constant 0 : i32
    %c0_i32_1 = arith.constant 0 : i32
    return %c0_i32, %c0_i32_0 : i32, i32
  }
  func.func @transform_8(%arg0: i32) -> (i32, i32) {
    %c0_i32 = arith.constant 0 : i32
    %c0_i32_0 = arith.constant 0 : i32
    return %arg0, %c0_i32 : i32, i32
  }
}

</mosaic_0001>

<llo_original>
// kernel: tpu_custom_call.1
$region0: #{tpu_custom_call.1}
  #allocation0 [shape = 'u32[]', space=smem, size = 0x4, offset = 0x4, fixed_abs, tag = 'smem constant byte address 0x4 - core index']
  #allocation1 [shape = 'u32[144,128]{1,0:T(1,128)}', space=vmem, size = 0x12000, scoped, tag = 'internal scratch']
  %s0 = inlined_call_operand.hbm [shape: bf16[16,256], index: 0, kind: input, shape index: {}]
  %s1 = inlined_call_operand.hbm [shape: f32[2,8,8], index: 1, kind: input, shape index: {}]
  %s2 = inlined_call_operand.hbm [shape: f32[8,128], index: 2, kind: input, shape index: {}]
  %s3 = inlined_call_operand.vmem [shape: f32[8,128], index: 3, kind: input, shape index: {}]
  %s4 = inlined_call_operand.hbm [shape: bf16[256,256], index: 4, kind: input, shape index: {}]
  %s5 = inlined_call_operand.hbm [shape: bf16[256,128], index: 5, kind: input, shape index: {}]
  %s6 = inlined_call_operand.hbm [shape: bf16[256,128], index: 6, kind: input, shape index: {}]
  %s7 = inlined_call_operand.hbm [shape: bf16[256,256], index: 7, kind: input, shape index: {}]
  %s8 = inlined_call_operand.hbm [shape: f32[16,256], index: 8, kind: output, shape index: {}]
  %s9 = sld [smem:[#allocation0]]
  $region93: #{tpu_custom_call.1} parent=0
    _
  %s11 = ssub.s32 1, %s9
  %s12 = scalar_select 0, %s11, %s9
  $region1: #{tpu_custom_call.1} parent=0
    #allocation2 [shape = 'u8[8192]{0}', space=vmem, size = 0x2000, scoped, tag = 'input window, operand 0']
    #allocation3 [shape = 's32[2]{0}', space=sflag, size = 0x8, scoped, tag = 'scoped memory for tpu_custom_call.1']
    #allocation4 [shape = 's32[2]{0}', space=sflag, size = 0x8, scoped, tag = 'scoped memory for tpu_custom_call.1']
    #allocation5 [shape = 'u8[8192]{0}', space=vmem, size = 0x2000, scoped, tag = 'input window, operand 1']
    #allocation6 [shape = 's32[2]{0}', space=sflag, size = 0x8, scoped, tag = 'scoped memory for tpu_custom_call.1']
    #allocation7 [shape = 'u8[4096]{0}', space=vmem, size = 0x1000, scoped, tag = 'input window, operand 2, single buffered']
    #allocation8 [shape = 'u8[131072]{0}', space=vmem, size = 0x20000, scoped, tag = 'input window, operand 4, single buffered']
    #allocation9 [shape = 's32[1]{0}', space=sflag, size = 0x4, scoped, tag = 'scoped memory for tpu_custom_call.1']
    #allocation10 [shape = 'u8[65536]{0}', space=vmem, size = 0x10000, scoped, tag = 'input window, operand 5, single buffered']
    #allocation11 [shape = 'u8[65536]{0}', space=vmem, size = 0x10000, scoped, tag = 'input window, operand 6, single buffered']
    #allocation12 [shape = 's32[1]{0}', space=sflag, size = 0x4, scoped, tag = 'scoped memory for tpu_custom_call.1']
    #allocation13 [shape = 'u8[131072]{0}', space=vmem, size = 0x20000, scoped, tag = 'input window, operand 7, single buffered']
    #allocation14 [shape = 'u8[16384]{0}', space=vmem, size = 0x4000, scoped, tag = 'output window, operand 0']
    %13 = vsyncpa [#allocation3], 0
    %s14 = scalar_lea.sflag [#allocation3], 1
    %15 = vsyncpa %s14, 0
    %16 = vsyncpa [#allocation6], 0
    %s17 = scalar_lea.sflag [#allocation6], 1
    %18 = vsyncpa %s17, 0
    %19 = vsyncpa [#allocation9], 0
    %20 = vsyncpa [#allocation12], 0
    %21 = vsyncpa [#allocation4], 0
    %s22 = scalar_lea.sflag [#allocation4], 1
    %23 = vsyncpa %s22, 0
    loop: start=0, step=1, limit=4
    $region2: #{tpu_custom_call.1} parent=1 // loop_pre_header
      _
    $region3: #{tpu_custom_call.1} parent=1 // loop_header
      %s25 = sphi 0, %s29
      %p26 = scmp.ge.s32.totalorder %s25, 4
      %s35 = sphi 0, %s37
      %s38 = sphi 0, %s35
      %s39 = sphi 0, %s38
      %s55 = sphi 0, %s39
      %s61 = sphi 0, %s63
      %s64 = sphi 0, %s61
      %s65 = sphi 0, %s64
      %s81 = sphi 0, %s65
      %s85 = sphi 0, %s85
      %s87 = sphi 0, %s85
      %s88 = sphi 0, %s87
      %s102 = sphi 0, %s88
      %s106 = sphi 0, %s106
      %s108 = sphi 0, %s106
      %s109 = sphi 0, %s108
      %s123 = sphi 0, %s109
      %s127 = sphi 0, %s127
      %s129 = sphi 0, %s127
      %s130 = sphi 0, %s129
      %s144 = sphi 0, %s130
      %s148 = sphi 0, %s148
      %s150 = sphi 0, %s148
      %s151 = sphi 0, %s150
      %s165 = sphi 0, %s151
      %s169 = sphi 0, %s169
      %s171 = sphi 0, %s169
      %s172 = sphi 0, %s171
      %s186 = sphi 0, %s172
      %s190 = sphi 0, %s190
      %s192 = sphi 0, %s190
      %s193 = sphi 0, %s192
      %s207 = sphi 0, %s193
      %s213 = sphi 0, %s215
      %s216 = sphi 0, %s213
      %s217 = sphi 0, %s216
      %s233 = sphi 0, %s217
    $region4: #{tpu_custom_call.1} parent=1 // loop_header_branch
      %28 = sbr.rel (%p26) target = $region8
    $region5: #{tpu_custom_call.1} parent=1 // loop_body
      %s30 = ssub.s32 %s25, 1
      %s31 = ssub.s32 %s25, 2
      %s32 = sadd.s32 %s25, 1
      %s33 = ssub.s32 %s25, %s32
      %p34 = scmp.eq.s32.totalorder %s33, 0
      %s36 = sadd.s32 %s35, 1
      %s37 = scalar_select %p34, %s35, %s36
      %p40 = pneg %p34
      %p41 = scmp.eq.s32.totalorder %s25, 1
      %p42 = por %p40, %p41
      %p43 = scmp.ne.s32.totalorder %s35, %s38
      %p44 = scmp.eq.s32.totalorder %s25, 0
      %p45 = por %p43, %p44
      %p46 = scmp.ne.s32.totalorder %s35, %s38
      %p47 = scmp.eq.s32.totalorder %s30, 1
      %p48 = por %p46, %p47
      %p49 = scmp.ne.s32.totalorder %s38, %s39
      %p50 = scmp.eq.s32.totalorder %s30, 0
      %p51 = por %p49, %p50
      %p52 = scmp.ne.s32.totalorder %s38, %s39
      %p53 = scmp.eq.s32.totalorder %s31, 1
      %p54 = por %p52, %p53
      %p56 = scmp.ne.s32.totalorder %s39, %s55
      %p57 = scmp.eq.s32.totalorder %s31, 0
      %p58 = por %p56, %p57
      %s59 = ssub.s32 %s25, %s32
      %p60 = scmp.eq.s32.totalorder %s59, 0
      %s62 = sadd.s32 %s61, 1
      %s63 = scalar_select %p60, %s61, %s62
      %p66 = pneg %p60
      %p67 = scmp.eq.s32.totalorder %s25, 1
      %p68 = por %p66, %p67
      %p69 = scmp.ne.s32.totalorder %s61, %s64
      %p70 = scmp.eq.s32.totalorder %s25, 0
      %p71 = por %p69, %p70
      %p72 = scmp.ne.s32.totalorder %s61, %s64
      %p73 = scmp.eq.s32.totalorder %s30, 1
      %p74 = por %p72, %p73
      %p75 = scmp.ne.s32.totalorder %s64, %s65
      %p76 = scmp.eq.s32.totalorder %s30, 0
      %p77 = por %p75, %p76
      %p78 = scmp.ne.s32.totalorder %s64, %s65
      %p79 = scmp.eq.s32.totalorder %s31, 1
      %p80 = por %p78, %p79
      %p82 = scmp.ne.s32.totalorder %s65, %s81
      %p83 = scmp.eq.s32.totalorder %s31, 0
      %p84 = por %p82, %p83
      %s86 = sadd.s32 %s85, 1
      %p89 = scmp.eq.s32.totalorder %s25, 1
      %p90 = scmp.ne.s32.totalorder %s85, %s87
      %p91 = scmp.eq.s32.totalorder %s25, 0
      %p92 = por %p90, %p91
      %p93 = scmp.ne.s32.totalorder %s85, %s87
      %p94 = scmp.eq.s32.totalorder %s30, 1
      %p95 = por %p93, %p94
      %p96 = scmp.ne.s32.totalorder %s87, %s88
      %p97 = scmp.eq.s32.totalorder %s30, 0
      %p98 = por %p96, %p97
      %p99 = scmp.ne.s32.totalorder %s87, %s88
      %p100 = scmp.eq.s32.totalorder %s31, 1
      %p101 = por %p99, %p100
      %p103 = scmp.ne.s32.totalorder %s88, %s102
      %p104 = scmp.eq.s32.totalorder %s31, 0
      %p105 = por %p103, %p104
      %s107 = sadd.s32 %s106, 1
      %p110 = scmp.eq.s32.totalorder %s25, 1
      %p111 = scmp.ne.s32.totalorder %s106, %s108
      %p112 = scmp.eq.s32.totalorder %s25, 0
      %p113 = por %p111, %p112
      %p114 = scmp.ne.s32.totalorder %s106, %s108
      %p115 = scmp.eq.s32.totalorder %s30, 1
      %p116 = por %p114, %p115
      %p117 = scmp.ne.s32.totalorder %s108, %s109
      %p118 = scmp.eq.s32.totalorder %s30, 0
      %p119 = por %p117, %p118
      %p120 = scmp.ne.s32.totalorder %s108, %s109
      %p121 = scmp.eq.s32.totalorder %s31, 1
      %p122 = por %p120, %p121
      %p124 = scmp.ne.s32.totalorder %s109, %s123
      %p125 = scmp.eq.s32.totalorder %s31, 0
      %p126 = por %p124, %p125
      %s128 = sadd.s32 %s127, 1
      %p131 = scmp.eq.s32.totalorder %s25, 1
      %p132 = scmp.ne.s32.totalorder %s127, %s129
      %p133 = scmp.eq.s32.totalorder %s25, 0
      %p134 = por %p132, %p133
      %p135 = scmp.ne.s32.totalorder %s127, %s129
      %p136 = scmp.eq.s32.totalorder %s30, 1
      %p137 = por %p135, %p136
      %p138 = scmp.ne.s32.totalorder %s129, %s130
      %p139 = scmp.eq.s32.totalorder %s30, 0
      %p140 = por %p138, %p139
      %p141 = scmp.ne.s32.totalorder %s129, %s130
      %p142 = scmp.eq.s32.totalorder %s31, 1
      %p143 = por %p141, %p142
      %p145 = scmp.ne.s32.totalorder %s130, %s144
      %p146 = scmp.eq.s32.totalorder %s31, 0
      %p147 = por %p145, %p146
      %s149 = sadd.s32 %s148, 1
      %p152 = scmp.eq.s32.totalorder %s25, 1
      %p153 = scmp.ne.s32.totalorder %s148, %s150
      %p154 = scmp.eq.s32.totalorder %s25, 0
      %p155 = por %p153, %p154
      %p156 = scmp.ne.s32.totalorder %s148, %s150
      %p157 = scmp.eq.s32.totalorder %s30, 1
      %p158 = por %p156, %p157
      %p159 = scmp.ne.s32.totalorder %s150, %s151
      %p160 = scmp.eq.s32.totalorder %s30, 0
      %p161 = por %p159, %p160
      %p162 = scmp.ne.s32.totalorder %s150, %s151
      %p163 = scmp.eq.s32.totalorder %s31, 1
      %p164 = por %p162, %p163
      %p166 = scmp.ne.s32.totalorder %s151, %s165
      %p167 = scmp.eq.s32.totalorder %s31, 0
      %p168 = por %p166, %p167
      %s170 = sadd.s32 %s169, 1
      %p173 = scmp.eq.s32.totalorder %s25, 1
      %p174 = scmp.ne.s32.totalorder %s169, %s171
      %p175 = scmp.eq.s32.totalorder %s25, 0
      %p176 = por %p174, %p175
      %p177 = scmp.ne.s32.totalorder %s169, %s171
      %p178 = scmp.eq.s32.totalorder %s30, 1
      %p179 = por %p177, %p178
      %p180 = scmp.ne.s32.totalorder %s171, %s172
      %p181 = scmp.eq.s32.totalorder %s30, 0
      %p182 = por %p180, %p181
      %p183 = scmp.ne.s32.totalorder %s171, %s172
      %p184 = scmp.eq.s32.totalorder %s31, 1
      %p185 = por %p183, %p184
      %p187 = scmp.ne.s32.totalorder %s172, %s186
      %p188 = scmp.eq.s32.totalorder %s31, 0
      %p189 = por %p187, %p188
      %s191 = sadd.s32 %s190, 1
      %p194 = scmp.eq.s32.totalorder %s25, 1
      %p195 = scmp.ne.s32.totalorder %s190, %s192
      %p196 = scmp.eq.s32.totalorder %s25, 0
      %p197 = por %p195, %p196
      %p198 = scmp.ne.s32.totalorder %s190, %s192
      %p199 = scmp.eq.s32.totalorder %s30, 1
      %p200 = por %p198, %p199
      %p201 = scmp.ne.s32.totalorder %s192, %s193
      %p202 = scmp.eq.s32.totalorder %s30, 0
      %p203 = por %p201, %p202
      %p204 = scmp.ne.s32.totalorder %s192, %s193
      %p205 = scmp.eq.s32.totalorder %s31, 1
      %p206 = por %p204, %p205
      %p208 = scmp.ne.s32.totalorder %s193, %s207
      %p209 = scmp.eq.s32.totalorder %s31, 0
      %p210 = por %p208, %p209
      %s211 = ssub.s32 %s25, %s32
      %p212 = scmp.eq.s32.totalorder %s211, 0
      %s214 = sadd.s32 %s213, 1
      %s215 = scalar_select %p212, %s213, %s214
      %p218 = pneg %p212
      %p219 = scmp.eq.s32.totalorder %s25, 1
      %p220 = por %p218, %p219
      %p221 = scmp.ne.s32.totalorder %s213, %s216
      %p222 = scmp.eq.s32.totalorder %s25, 0
      %p223 = por %p221, %p222
      %p224 = scmp.ne.s32.totalorder %s213, %s216
      %p225 = scmp.eq.s32.totalorder %s30, 1
      %p226 = por %p224, %p225
      %p227 = scmp.ne.s32.totalorder %s216, %s217
      %p228 = scmp.eq.s32.totalorder %s30, 0
      %p229 = por %p227, %p228
      %p230 = scmp.ne.s32.totalorder %s216, %s217
      %p231 = scmp.eq.s32.totalorder %s31, 1
      %p232 = por %p230, %p231
      %p234 = scmp.ne.s32.totalorder %s217, %s233
      %p235 = scmp.eq.s32.totalorder %s31, 0
      %p236 = por %p234, %p235
      %p237 = scmp.le.s32.totalorder 1, %s25
      %p238 = scmp.lt.s32.totalorder %s25, 3
      %p239 = pnand %p237, %p238
      %p240 = pneg %p239
      // Predicated region
      $region9: #{tpu_custom_call.1} parent=5 // pred_check
        _
      $region10: #{tpu_custom_call.1} parent=5 // pred_check_branch
        %242 = sbr.rel (%p239) target = $region12
      $region11: #{tpu_custom_call.1} parent=5 // pred_region
        %s243 = ssub.s32 %s25, 1
        // Predicated region
        $region13: #{tpu_custom_call.1} parent=11 // pred_check
          %p244 = pneg %p98
        $region14: #{tpu_custom_call.1} parent=11 // pred_check_branch
          %246 = sbr.rel (%p244) target = $region16
        $region15: #{tpu_custom_call.1} parent=11 // pred_region
          %s248 = ssub.s32 128, 128
          %249 = vsyncadd [#allocation6], %s248
          %s251 = sshll.u32 [#allocation7], 4
          %s252 = int_to_ptr.vmem [resolvable:$true] %s251
          %254 = dma.hbm_to_vmem [thread:$0]  %s2, 128, %s252, [#allocation6]
        $region16: #{tpu_custom_call.1} parent=11 // pred_fallthru
          _
        // Predicated region
        $region17: #{tpu_custom_call.1} parent=11 // pred_check
          %p255 = pneg %p119
        $region18: #{tpu_custom_call.1} parent=11 // pred_check_branch
          %257 = sbr.rel (%p255) target = $region20
        $region19: #{tpu_custom_call.1} parent=11 // pred_region
          _
        $region20: #{tpu_custom_call.1} parent=11 // pred_fallthru
          _
        // Predicated region
        $region21: #{tpu_custom_call.1} parent=11 // pred_check
          %p258 = pneg %p140
        $region22: #{tpu_custom_call.1} parent=11 // pred_check_branch
          %260 = sbr.rel (%p258) target = $region24
        $region23: #{tpu_custom_call.1} parent=11 // pred_region
          %s262 = ssub.s32 4096, 4096
          %263 = vsyncadd [#allocation9], %s262
          %s264 = sshll.u32 [#allocation8], 4
          %s265 = int_to_ptr.vmem [resolvable:$true] %s264
          %270 = dma.hbm_to_vmem [thread:$0]  %s4, 4096, %s265, [#allocation9], 128, 128, 8
        $region24: #{tpu_custom_call.1} parent=11 // pred_fallthru
          _
        // Predicated region
        $region25: #{tpu_custom_call.1} parent=11 // pred_check
          %p271 = pneg %p161
        $region26: #{tpu_custom_call.1} parent=11 // pred_check_branch
          %273 = sbr.rel (%p271) target = $region28
        $region27: #{tpu_custom_call.1} parent=11 // pred_region
          %s275 = ssub.s32 2048, 2048
          %276 = vsyncadd [#allocation9], %s275
          %s277 = sshll.u32 [#allocation10], 4
          %s278 = int_to_ptr.vmem [resolvable:$true] %s277
          %283 = dma.hbm_to_vmem [thread:$0]  %s5, 2048, %s278, [#allocation9], 64, 64, 4
        $region28: #{tpu_custom_call.1} parent=11 // pred_fallthru
          _
        // Predicated region
        $region29: #{tpu_custom_call.1} parent=11 // pred_check
          %p284 = pneg %p182
        $region30: #{tpu_custom_call.1} parent=11 // pred_check_branch
          %286 = sbr.rel (%p284) target = $region32
        $region31: #{tpu_custom_call.1} parent=11 // pred_region
          %s288 = ssub.s32 2048, 2048
          %289 = vsyncadd [#allocation12], %s288
          %s290 = sshll.u32 [#allocation11], 4
          %s291 = int_to_ptr.vmem [resolvable:$true] %s290
          %296 = dma.hbm_to_vmem [thread:$0]  %s6, 2048, %s291, [#allocation12], 64, 64, 4
        $region32: #{tpu_custom_call.1} parent=11 // pred_fallthru
          _
        // Predicated region
        $region33: #{tpu_custom_call.1} parent=11 // pred_check
          %p297 = pneg %p203
        $region34: #{tpu_custom_call.1} parent=11 // pred_check_branch
          %299 = sbr.rel (%p297) target = $region36
        $region35: #{tpu_custom_call.1} parent=11 // pred_region
          %s301 = ssub.s32 4096, 4096
          %302 = vsyncadd [#allocation12], %s301
          %s303 = sshll.u32 [#allocation13], 4
          %s304 = int_to_ptr.vmem [resolvable:$true] %s303
          %309 = dma.hbm_to_vmem [thread:$0]  %s7, 4096, %s304, [#allocation12], 128, 128, 8
        $region36: #{tpu_custom_call.1} parent=11 // pred_fallthru
          _
      $region12: #{tpu_custom_call.1} parent=5 // pred_fallthru
        _
      %p310 = scmp.lt.s32.totalorder %s25, 2
      // Predicated region
      $region37: #{tpu_custom_call.1} parent=5 // pred_check
        %p311 = pneg %p310
      $region38: #{tpu_custom_call.1} parent=5 // pred_check_branch
        %313 = sbr.rel (%p311) target = $region40
      $region39: #{tpu_custom_call.1} parent=5 // pred_region
        // Predicated region
        $region41: #{tpu_custom_call.1} parent=39 // pred_check
          %p314 = pneg %p45
        $region42: #{tpu_custom_call.1} parent=39 // pred_check_branch
          %316 = sbr.rel (%p314) target = $region44
        $region43: #{tpu_custom_call.1} parent=39 // pred_region
          %s317 = sand.u32 %s35, 1
          %s318 = scalar_lea.sflag [#allocation3], %s317
          %s319 = sand.u32 %s35, 1
          %s320 = smul.addr %s319, 8
          %s321 = scalar_lea.vmem [#allocation2], %s320
          %s323 = ssub.s32 128, 128
          %324 = vsyncadd %s318, %s323
          %s325 = smul.addr %s25, 2
          %s326 = smul.addr %s325, 64
          %s327 = scalar_lea.hbm %s0, %s326
          %s329 = sshll.u32 %s321, 4
          %s330 = int_to_ptr.vmem [resolvable:$true] %s329
          %332 = dma.hbm_to_vmem [thread:$0]  %s327, 128, %s330, %s318
        $region44: #{tpu_custom_call.1} parent=39 // pred_fallthru
          _
        // Predicated region
        $region45: #{tpu_custom_call.1} parent=39 // pred_check
          %p333 = pneg %p71
        $region46: #{tpu_custom_call.1} parent=39 // pred_check_branch
          %335 = sbr.rel (%p333) target = $region48
        $region47: #{tpu_custom_call.1} parent=39 // pred_region
          %s336 = sand.u32 %s25, 1
          %s337 = scalar_lea.sflag [#allocation6], %s336
          %s338 = sand.u32 %s61, 1
          %s339 = smul.addr %s338, 8
          %s340 = scalar_lea.vmem [#allocation5], %s339
          %s342 = ssub.s32 128, 128
          %343 = vsyncadd %s337, %s342
          %s344 = smul.addr %s25, 128
          %s345 = scalar_lea.hbm %s1, %s344
          %s347 = sshll.u32 %s340, 4
          %s348 = int_to_ptr.vmem [resolvable:$true] %s347
          %350 = dma.hbm_to_vmem [thread:$0]  %s345, 128, %s348, %s337
        $region48: #{tpu_custom_call.1} parent=39 // pred_fallthru
          _
      $region40: #{tpu_custom_call.1} parent=5 // pred_fallthru
        _
      %p351 = scmp.le.s32.totalorder 1, %s25
      %p352 = scmp.lt.s32.totalorder %s25, 3
      %p353 = pnand %p351, %p352
      %p354 = pneg %p353
      // Predicated region
      $region49: #{tpu_custom_call.1} parent=5 // pred_check
        _
      $region50: #{tpu_custom_call.1} parent=5 // pred_check_branch
        %356 = sbr.rel (%p353) target = $region52
      $region51: #{tpu_custom_call.1} parent=5 // pred_region
        %s357 = ssub.s32 %s25, 1
        %s358 = sand.u32 %s38, 1
        %s359 = scalar_lea.sflag [#allocation3], %s358
        %s360 = sand.u32 %s38, 1
        %s361 = smul.addr %s360, 8
        %s362 = scalar_lea.vmem [#allocation2], %s361
        // Predicated region
        $region53: #{tpu_custom_call.1} parent=51 // pred_check
          %p363 = pneg %p51
        $region54: #{tpu_custom_call.1} parent=51 // pred_check_branch
          %365 = sbr.rel (%p363) target = $region56
        $region55: #{tpu_custom_call.1} parent=51 // pred_region
          %366 = dma.done %s359, 128
        $region56: #{tpu_custom_call.1} parent=51 // pred_fallthru
          _
        %s367 = sand.u32 %s30, 1
        %s368 = scalar_lea.sflag [#allocation6], %s367
        %s369 = sand.u32 %s64, 1
        %s370 = smul.addr %s369, 8
        %s371 = scalar_lea.vmem [#allocation5], %s370
        // Predicated region
        $region57: #{tpu_custom_call.1} parent=51 // pred_check
          %p372 = pneg %p77
        $region58: #{tpu_custom_call.1} parent=51 // pred_check_branch
          %374 = sbr.rel (%p372) target = $region60
        $region59: #{tpu_custom_call.1} parent=51 // pred_region
          %375 = dma.done %s368, 128
        $region60: #{tpu_custom_call.1} parent=51 // pred_fallthru
          _
        // Predicated region
        $region61: #{tpu_custom_call.1} parent=51 // pred_check
          %p376 = pneg %p98
        $region62: #{tpu_custom_call.1} parent=51 // pred_check_branch
          %378 = sbr.rel (%p376) target = $region64
        $region63: #{tpu_custom_call.1} parent=51 // pred_region
          %379 = dma.done [#allocation6], 128
        $region64: #{tpu_custom_call.1} parent=51 // pred_fallthru
          _
        // Predicated region
        $region65: #{tpu_custom_call.1} parent=51 // pred_check
          %p380 = pneg %p140
        $region66: #{tpu_custom_call.1} parent=51 // pred_check_branch
          %382 = sbr.rel (%p380) target = $region68
        $region67: #{tpu_custom_call.1} parent=51 // pred_region
          %383 = dma.done [#allocation9], 4096
        $region68: #{tpu_custom_call.1} parent=51 // pred_fallthru
          _
        // Predicated region
        $region69: #{tpu_custom_call.1} parent=51 // pred_check
          %p384 = pneg %p161
        $region70: #{tpu_custom_call.1} parent=51 // pred_check_branch
          %386 = sbr.rel (%p384) target = $region72
        $region71: #{tpu_custom_call.1} parent=51 // pred_region
          %387 = dma.done [#allocation9], 2048
        $region72: #{tpu_custom_call.1} parent=51 // pred_fallthru
          _
        // Predicated region
        $region73: #{tpu_custom_call.1} parent=51 // pred_check
          %p388 = pneg %p182
        $region74: #{tpu_custom_call.1} parent=51 // pred_check_branch
          %390 = sbr.rel (%p388) target = $region76
        $region75: #{tpu_custom_call.1} parent=51 // pred_region
          %391 = dma.done [#allocation12], 2048
        $region76: #{tpu_custom_call.1} parent=51 // pred_fallthru
          _
        // Predicated region
        $region77: #{tpu_custom_call.1} parent=51 // pred_check
          %p392 = pneg %p203
        $region78: #{tpu_custom_call.1} parent=51 // pred_check_branch
          %394 = sbr.rel (%p392) target = $region80
        $region79: #{tpu_custom_call.1} parent=51 // pred_region
          %395 = dma.done [#allocation12], 4096
        $region80: #{tpu_custom_call.1} parent=51 // pred_fallthru
          _
        %s396 = sand.u32 %s38, 1
        %s397 = scalar_lea.sflag [#allocation3], %s396
        %s398 = sand.u32 %s38, 1
        %s399 = smul.addr %s398, 8
        %s400 = scalar_lea.vmem [#allocation2], %s399
        %p401 = pneg %p51
        %p402 = pneg %p48
        %s403 = sand.u32 %s30, 1
        %s404 = scalar_lea.sflag [#allocation6], %s403
        %s405 = sand.u32 %s64, 1
        %s406 = smul.addr %s405, 8
        %s407 = scalar_lea.vmem [#allocation5], %s406
        %p408 = pneg %p77
        %p409 = pneg %p74
        %p410 = pneg %p98
        %p411 = pneg %p95
        %p412 = pneg %p119
        %p413 = pneg %p116
        %p414 = pneg %p140
        %p415 = pneg %p137
        %p416 = pneg %p161
        %p417 = pneg %p158
        %p418 = pneg %p182
        %p419 = pneg %p179
        %p420 = pneg %p203
        %p421 = pneg %p200
        %p422 = pneg %p229
        %p423 = pneg %p226
        %s424 = sand.u32 %s216, 1
        %s425 = scalar_lea.sflag [#allocation4], %s424
        %s426 = sand.u32 %s216, 1
        %s427 = smul.addr %s426, 16
        %s428 = scalar_lea.vmem [#allocation14], %s427
        %v430 = vld [vmem:[%s362] sm:$0xff]
        %v431 = vld [vmem:[#allocation8] sm:$0xff]
        %v432 = vld [vmem:[#allocation8 + $0x8] sm:$0xff]
        %v433 = vld [vmem:[#allocation8 + $0x10] sm:$0xff]
        %v434 = vld [vmem:[#allocation8 + $0x18] sm:$0xff]
        %v435 = vld [vmem:[#allocation8 + $0x20] sm:$0xff]
        %v436 = vld [vmem:[#allocation8 + $0x28] sm:$0xff]
        %v437 = vld [vmem:[#allocation8 + $0x30] sm:$0xff]
        %v438 = vld [vmem:[#allocation8 + $0x38] sm:$0xff]
        %v439 = vld [vmem:[#allocation8 + $0x40] sm:$0xff]
        %v440 = vld [vmem:[#allocation8 + $0x48] sm:$0xff]
        %v441 = vld [vmem:[#allocation8 + $0x50] sm:$0xff]
        %v442 = vld [vmem:[#allocation8 + $0x58] sm:$0xff]
        %v443 = vld [vmem:[#allocation8 + $0x60] sm:$0xff]
        %v444 = vld [vmem:[#allocation8 + $0x68] sm:$0xff]
        %v445 = vld [vmem:[#allocation8 + $0x70] sm:$0xff]
        %v446 = vld [vmem:[#allocation8 + $0x78] sm:$0xff]
        %v447 = vld [vmem:[#allocation8 + $0x80] sm:$0xff]
        %v448 = vld [vmem:[#allocation8 + $0x88] sm:$0xff]
        %v449 = vld [vmem:[#allocation8 + $0x90] sm:$0xff]
        %v450 = vld [vmem:[#allocation8 + $0x98] sm:$0xff]
        %v451 = vld [vmem:[#allocation8 + $0xa0] sm:$0xff]
        %v452 = vld [vmem:[#allocation8 + $0xa8] sm:$0xff]
        %v453 = vld [vmem:[#allocation8 + $0xb0] sm:$0xff]
        %v454 = vld [vmem:[#allocation8 + $0xb8] sm:$0xff]
        %v455 = vld [vmem:[#allocation8 + $0xc0] sm:$0xff]
        %v456 = vld [vmem:[#allocation8 + $0xc8] sm:$0xff]
        %v457 = vld [vmem:[#allocation8 + $0xd0] sm:$0xff]
        %v458 = vld [vmem:[#allocation8 + $0xd8] sm:$0xff]
        %v459 = vld [vmem:[#allocation8 + $0xe0] sm:$0xff]
        %v460 = vld [vmem:[#allocation8 + $0xe8] sm:$0xff]
        %v461 = vld [vmem:[#allocation8 + $0xf0] sm:$0xff]
        %v462 = vld [vmem:[#allocation8 + $0xf8] sm:$0xff]
        %v464 = vunpack.c.l.b16 %v430
        %v465 = vunpack.c.h.b16 %v430
        %v466 = vpack.c.b16 %v464, %v464
        %v467 = vpack.c.b16 %v465, %v465
        %v502 = vunpack.c.l.b16 %v431
        %v503 = vunpack.c.h.b16 %v431
        %v504 = vunpack.c.l.b16 %v432
        %v505 = vunpack.c.h.b16 %v432
        %v506 = vunpack.c.l.b16 %v433
        %v507 = vunpack.c.h.b16 %v433
        %v508 = vunpack.c.l.b16 %v434
        %v509 = vunpack.c.h.b16 %v434
        %v510 = vunpack.c.l.b16 %v435
        %v511 = vunpack.c.h.b16 %v435
        %v512 = vunpack.c.l.b16 %v436
        %v513 = vunpack.c.h.b16 %v436
        %v514 = vunpack.c.l.b16 %v437
        %v515 = vunpack.c.h.b16 %v437
        %v516 = vunpack.c.l.b16 %v438
        %v517 = vunpack.c.h.b16 %v438
        %v518 = vunpack.c.l.b16 %v439
        %v519 = vunpack.c.h.b16 %v439
        %v520 = vunpack.c.l.b16 %v440
        %v521 = vunpack.c.h.b16 %v440
        %v522 = vunpack.c.l.b16 %v441
        %v523 = vunpack.c.h.b16 %v441
        %v524 = vunpack.c.l.b16 %v442
        %v525 = vunpack.c.h.b16 %v442
        %v526 = vunpack.c.l.b16 %v443
        %v527 = vunpack.c.h.b16 %v443
        %v528 = vunpack.c.l.b16 %v444
        %v529 = vunpack.c.h.b16 %v444
        %v530 = vunpack.c.l.b16 %v445
        %v531 = vunpack.c.h.b16 %v445
        %v532 = vunpack.c.l.b16 %v446
        %v533 = vunpack.c.h.b16 %v446
        %v534 = vunpack.c.l.b16 %v447
        %v535 = vunpack.c.h.b16 %v447
        %v536 = vunpack.c.l.b16 %v448
        %v537 = vunpack.c.h.b16 %v448
        %v538 = vunpack.c.l.b16 %v449
        %v539 = vunpack.c.h.b16 %v449
        %v540 = vunpack.c.l.b16 %v450
        %v541 = vunpack.c.h.b16 %v450
        %v542 = vunpack.c.l.b16 %v451
        %v543 = vunpack.c.h.b16 %v451
        %v544 = vunpack.c.l.b16 %v452
        %v545 = vunpack.c.h.b16 %v452
        %v546 = vunpack.c.l.b16 %v453
        %v547 = vunpack.c.h.b16 %v453
        %v548 = vunpack.c.l.b16 %v454
        %v549 = vunpack.c.h.b16 %v454
        %v550 = vunpack.c.l.b16 %v455
        %v551 = vunpack.c.h.b16 %v455
        %v552 = vunpack.c.l.b16 %v456
        %v553 = vunpack.c.h.b16 %v456
        %v554 = vunpack.c.l.b16 %v457
        %v555 = vunpack.c.h.b16 %v457
        %v556 = vunpack.c.l.b16 %v458
        %v557 = vunpack.c.h.b16 %v458
        %v558 = vunpack.c.l.b16 %v459
        %v559 = vunpack.c.h.b16 %v459
        %v560 = vunpack.c.l.b16 %v460
        %v561 = vunpack.c.h.b16 %v460
        %v562 = vunpack.c.l.b16 %v461
        %v563 = vunpack.c.h.b16 %v461
        %v564 = vunpack.c.l.b16 %v462
        %v565 = vunpack.c.h.b16 %v462
        %v566 = vpack.c.b16 %v504, %v502
        %v567 = vpack.c.b16 %v505, %v503
        %v568 = vpack.c.b16 %v508, %v506
        %v569 = vpack.c.b16 %v509, %v507
        %v570 = vpack.c.b16 %v512, %v510
        %v571 = vpack.c.b16 %v513, %v511
        %v572 = vpack.c.b16 %v516, %v514
        %v573 = vpack.c.b16 %v517, %v515
        %v574 = vpack.c.b16 %v520, %v518
        %v575 = vpack.c.b16 %v521, %v519
        %v576 = vpack.c.b16 %v524, %v522
        %v577 = vpack.c.b16 %v525, %v523
        %v578 = vpack.c.b16 %v528, %v526
        %v579 = vpack.c.b16 %v529, %v527
        %v580 = vpack.c.b16 %v532, %v530
        %v581 = vpack.c.b16 %v533, %v531
        %v582 = vpack.c.b16 %v536, %v534
        %v583 = vpack.c.b16 %v537, %v535
        %v584 = vpack.c.b16 %v540, %v538
        %v585 = vpack.c.b16 %v541, %v539
        %v586 = vpack.c.b16 %v544, %v542
        %v587 = vpack.c.b16 %v545, %v543
        %v588 = vpack.c.b16 %v548, %v546
        %v589 = vpack.c.b16 %v549, %v547
        %v590 = vpack.c.b16 %v552, %v550
        %v591 = vpack.c.b16 %v553, %v551
        %v592 = vpack.c.b16 %v556, %v554
        %v593 = vpack.c.b16 %v557, %v555
        %v594 = vpack.c.b16 %v560, %v558
        %v595 = vpack.c.b16 %v561, %v559
        %v596 = vpack.c.b16 %v564, %v562
        %v597 = vpack.c.b16 %v565, %v563
        %630 = vmatprep.subr.bf16.mxu0 %v567
        %631 = vmatpush1.bf16.msra.mxu0 %v566
        %632 = vmatprep.subr.bf16.mxu0 %v569
        %633 = vmatpush1.bf16.msra.mxu0 %v568
        %634 = vmatprep.subr.bf16.mxu0 %v571
        %635 = vmatpush1.bf16.msra.mxu0 %v570
        %636 = vmatprep.subr.bf16.mxu0 %v573
        %637 = vmatpush1.bf16.msra.mxu0 %v572
        %638 = vmatprep.subr.bf16.mxu0 %v575
        %639 = vmatpush1.bf16.msra.mxu0 %v574
        %640 = vmatprep.subr.bf16.mxu0 %v577
        %641 = vmatpush1.bf16.msra.mxu0 %v576
        %642 = vmatprep.subr.bf16.mxu0 %v579
        %643 = vmatpush1.bf16.msra.mxu0 %v578
        %644 = vmatprep.subr.bf16.mxu0 %v581
        %645 = vmatpush1.bf16.msra.mxu0 %v580
        %646 = vmatprep.subr.bf16.mxu0 %v583
        %647 = vmatpush1.bf16.msra.mxu0 %v582
        %648 = vmatprep.subr.bf16.mxu0 %v585
        %649 = vmatpush1.bf16.msra.mxu0 %v584
        %650 = vmatprep.subr.bf16.mxu0 %v587
        %651 = vmatpush1.bf16.msra.mxu0 %v586
        %652 = vmatprep.subr.bf16.mxu0 %v589
        %653 = vmatpush1.bf16.msra.mxu0 %v588
        %654 = vmatprep.subr.bf16.mxu0 %v591
        %655 = vmatpush1.bf16.msra.mxu0 %v590
        %656 = vmatprep.subr.bf16.mxu0 %v593
        %657 = vmatpush1.bf16.msra.mxu0 %v592
        %658 = vmatprep.subr.bf16.mxu0 %v595
        %659 = vmatpush1.bf16.msra.mxu0 %v594
        %660 = vmatprep.subr.bf16.mxu0 %v597
        %661 = vmatpush1.bf16.msra.mxu0 %v596
        %662 = vmatprep.mubr.bf16.mxu0 %v467
        %663 = vmatmul.mubr.bf16.gmra.mrb[0].mxu0 %v466
        %v664 = vpop.f32.mrb[0].mxu0
        %v665 = vadd.f32 0.0, %v664
        %v666 = vpop.f32.mrb[0].mxu0
        %v667 = vadd.f32 0.0, %v666
        %v668 = vpop.f32.mrb[0].mxu0
        %v669 = vpop.f32.mrb[0].mxu0
        %670 = vdwg.mxu0
        %v671 = vld [vmem:[#allocation10] sm:$0xf]
        %v672 = vld [vmem:[#allocation10 + $0x4] sm:$0xf]
        %v673 = vld [vmem:[#allocation10 + $0x8] sm:$0xf]
        %v674 = vld [vmem:[#allocation10 + $0xc] sm:$0xf]
        %v675 = vld [vmem:[#allocation10 + $0x10] sm:$0xf]
        %v676 = vld [vmem:[#allocation10 + $0x14] sm:$0xf]
        %v677 = vld [vmem:[#allocation10 + $0x18] sm:$0xf]
        %v678 = vld [vmem:[#allocation10 + $0x1c] sm:$0xf]
        %v679 = vld [vmem:[#allocation10 + $0x20] sm:$0xf]
        %v680 = vld [vmem:[#allocation10 + $0x24] sm:$0xf]
        %v681 = vld [vmem:[#allocation10 + $0x28] sm:$0xf]
        %v682 = vld [vmem:[#allocation10 + $0x2c] sm:$0xf]
        %v683 = vld [vmem:[#allocation10 + $0x30] sm:$0xf]
        %v684 = vld [vmem:[#allocation10 + $0x34] sm:$0xf]
        %v685 = vld [vmem:[#allocation10 + $0x38] sm:$0xf]
        %v686 = vld [vmem:[#allocation10 + $0x3c] sm:$0xf]
        %v687 = vld [vmem:[#allocation10 + $0x40] sm:$0xf]
        %v688 = vld [vmem:[#allocation10 + $0x44] sm:$0xf]
        %v689 = vld [vmem:[#allocation10 + $0x48] sm:$0xf]
        %v690 = vld [vmem:[#allocation10 + $0x4c] sm:$0xf]
        %v691 = vld [vmem:[#allocation10 + $0x50] sm:$0xf]
        %v692 = vld [vmem:[#allocation10 + $0x54] sm:$0xf]
        %v693 = vld [vmem:[#allocation10 + $0x58] sm:$0xf]
        %v694 = vld [vmem:[#allocation10 + $0x5c] sm:$0xf]
        %v695 = vld [vmem:[#allocation10 + $0x60] sm:$0xf]
        %v696 = vld [vmem:[#allocation10 + $0x64] sm:$0xf]
        %v697 = vld [vmem:[#allocation10 + $0x68] sm:$0xf]
        %v698 = vld [vmem:[#allocation10 + $0x6c] sm:$0xf]
        %v699 = vld [vmem:[#allocation10 + $0x70] sm:$0xf]
        %v700 = vld [vmem:[#allocation10 + $0x74] sm:$0xf]
        %v701 = vld [vmem:[#allocation10 + $0x78] sm:$0xf]
        %v702 = vld [vmem:[#allocation10 + $0x7c] sm:$0xf]
        %v735 = vunpack.c.l.b16 %v671
        %v736 = vunpack.c.l.b16 %v672
        %v737 = vunpack.c.l.b16 %v673
        %v738 = vunpack.c.l.b16 %v674
        %v739 = vunpack.c.l.b16 %v675
        %v740 = vunpack.c.l.b16 %v676
        %v741 = vunpack.c.l.b16 %v677
        %v742 = vunpack.c.l.b16 %v678
        %v743 = vunpack.c.l.b16 %v679
        %v744 = vunpack.c.l.b16 %v680
        %v745 = vunpack.c.l.b16 %v681
        %v746 = vunpack.c.l.b16 %v682
        %v747 = vunpack.c.l.b16 %v683
        %v748 = vunpack.c.l.b16 %v684
        %v749 = vunpack.c.l.b16 %v685
        %v750 = vunpack.c.l.b16 %v686
        %v751 = vunpack.c.l.b16 %v687
        %v752 = vunpack.c.l.b16 %v688
        %v753 = vunpack.c.l.b16 %v689
        %v754 = vunpack.c.l.b16 %v690
        %v755 = vunpack.c.l.b16 %v691
        %v756 = vunpack.c.l.b16 %v692
        %v757 = vunpack.c.l.b16 %v693
        %v758 = vunpack.c.l.b16 %v694
        %v759 = vunpack.c.l.b16 %v695
        %v760 = vunpack.c.l.b16 %v696
        %v761 = vunpack.c.l.b16 %v697
        %v762 = vunpack.c.l.b16 %v698
        %v763 = vunpack.c.l.b16 %v699
        %v764 = vunpack.c.l.b16 %v700
        %v765 = vunpack.c.l.b16 %v701
        %v766 = vunpack.c.l.b16 %v702
        %v767 = vpack.c.b16 %v736, %v735
        %v768 = vpack.c.b16 %v738, %v737
        %v769 = vpack.c.b16 %v740, %v739
        %v770 = vpack.c.b16 %v742, %v741
        %v771 = vpack.c.b16 %v744, %v743
        %v772 = vpack.c.b16 %v746, %v745
        %v773 = vpack.c.b16 %v748, %v747
        %v774 = vpack.c.b16 %v750, %v749
        %v775 = vpack.c.b16 %v752, %v751
        %v776 = vpack.c.b16 %v754, %v753
        %v777 = vpack.c.b16 %v756, %v755
        %v778 = vpack.c.b16 %v758, %v757
        %v779 = vpack.c.b16 %v760, %v759
        %v780 = vpack.c.b16 %v762, %v761
        %v781 = vpack.c.b16 %v764, %v763
        %v782 = vpack.c.b16 %v766, %v765
        %799 = vmatprep.subr.bf16.mxu0 0
        %800 = vmatpush1.bf16.msra.mxu0 %v767
        %801 = vmatprep.subr.bf16.mxu0 0
        %802 = vmatpush1.bf16.msra.mxu0 %v768
        %803 = vmatprep.subr.bf16.mxu0 0
        %804 = vmatpush1.bf16.msra.mxu0 %v769
        %805 = vmatprep.subr.bf16.mxu0 0
        %806 = vmatpush1.bf16.msra.mxu0 %v770
        %807 = vmatprep.subr.bf16.mxu0 0
        %808 = vmatpush1.bf16.msra.mxu0 %v771
        %809 = vmatprep.subr.bf16.mxu0 0
        %810 = vmatpush1.bf16.msra.mxu0 %v772
        %811 = vmatprep.subr.bf16.mxu0 0
        %812 = vmatpush1.bf16.msra.mxu0 %v773
        %813 = vmatprep.subr.bf16.mxu0 0
        %814 = vmatpush1.bf16.msra.mxu0 %v774
        %815 = vmatprep.subr.bf16.mxu0 0
        %816 = vmatpush1.bf16.msra.mxu0 %v775
        %817 = vmatprep.subr.bf16.mxu0 0
        %818 = vmatpush1.bf16.msra.mxu0 %v776
        %819 = vmatprep.subr.bf16.mxu0 0
        %820 = vmatpush1.bf16.msra.mxu0 %v777
        %821 = vmatprep.subr.bf16.mxu0 0
        %822 = vmatpush1.bf16.msra.mxu0 %v778
        %823 = vmatprep.subr.bf16.mxu0 0
        %824 = vmatpush1.bf16.msra.mxu0 %v779
        %825 = vmatprep.subr.bf16.mxu0 0
        %826 = vmatpush1.bf16.msra.mxu0 %v780
        %827 = vmatprep.subr.bf16.mxu0 0
        %828 = vmatpush1.bf16.msra.mxu0 %v781
        %829 = vmatprep.subr.bf16.mxu0 0
        %830 = vmatpush1.bf16.msra.mxu0 %v782
        %831 = vmatprep.mubr.bf16.mxu0 %v467
        %832 = vmatmul.mubr.bf16.gmra.mrb[0].mxu0 %v466
        %v833 = vpop.f32.mrb[0].mxu0
        %v834 = vadd.f32 0.0, %v833
        %v835 = vpop.f32.mrb[0].mxu0
        %v836 = vpop.f32.mrb[0].mxu0
        %v837 = vpop.f32.mrb[0].mxu0
        %838 = vdwg.mxu0
        %v839 = vld [vmem:[#allocation11] sm:$0xf]
        %v840 = vld [vmem:[#allocation11 + $0x4] sm:$0xf]
        %v841 = vld [vmem:[#allocation11 + $0x8] sm:$0xf]
        %v842 = vld [vmem:[#allocation11 + $0xc] sm:$0xf]
        %v843 = vld [vmem:[#allocation11 + $0x10] sm:$0xf]
        %v844 = vld [vmem:[#allocation11 + $0x14] sm:$0xf]
        %v845 = vld [vmem:[#allocation11 + $0x18] sm:$0xf]
        %v846 = vld [vmem:[#allocation11 + $0x1c] sm:$0xf]
        %v847 = vld [vmem:[#allocation11 + $0x20] sm:$0xf]
        %v848 = vld [vmem:[#allocation11 + $0x24] sm:$0xf]
        %v849 = vld [vmem:[#allocation11 + $0x28] sm:$0xf]
        %v850 = vld [vmem:[#allocation11 + $0x2c] sm:$0xf]
        %v851 = vld [vmem:[#allocation11 + $0x30] sm:$0xf]
        %v852 = vld [vmem:[#allocation11 + $0x34] sm:$0xf]
        %v853 = vld [vmem:[#allocation11 + $0x38] sm:$0xf]
        %v854 = vld [vmem:[#allocation11 + $0x3c] sm:$0xf]
        %v855 = vld [vmem:[#allocation11 + $0x40] sm:$0xf]
        %v856 = vld [vmem:[#allocation11 + $0x44] sm:$0xf]
        %v857 = vld [vmem:[#allocation11 + $0x48] sm:$0xf]
        %v858 = vld [vmem:[#allocation11 + $0x4c] sm:$0xf]
        %v859 = vld [vmem:[#allocation11 + $0x50] sm:$0xf]
        %v860 = vld [vmem:[#allocation11 + $0x54] sm:$0xf]
        %v861 = vld [vmem:[#allocation11 + $0x58] sm:$0xf]
        %v862 = vld [vmem:[#allocation11 + $0x5c] sm:$0xf]
        %v863 = vld [vmem:[#allocation11 + $0x60] sm:$0xf]
        %v864 = vld [vmem:[#allocation11 + $0x64] sm:$0xf]
        %v865 = vld [vmem:[#allocation11 + $0x68] sm:$0xf]
        %v866 = vld [vmem:[#allocation11 + $0x6c] sm:$0xf]
        %v867 = vld [vmem:[#allocation11 + $0x70] sm:$0xf]
        %v868 = vld [vmem:[#allocation11 + $0x74] sm:$0xf]
        %v869 = vld [vmem:[#allocation11 + $0x78] sm:$0xf]
        %v870 = vld [vmem:[#allocation11 + $0x7c] sm:$0xf]
        %v903 = vunpack.c.l.b16 %v839
        %v904 = vunpack.c.l.b16 %v840
        %v905 = vunpack.c.l.b16 %v841
        %v906 = vunpack.c.l.b16 %v842
        %v907 = vunpack.c.l.b16 %v843
        %v908 = vunpack.c.l.b16 %v844
        %v909 = vunpack.c.l.b16 %v845
        %v910 = vunpack.c.l.b16 %v846
        %v911 = vunpack.c.l.b16 %v847
        %v912 = vunpack.c.l.b16 %v848
        %v913 = vunpack.c.l.b16 %v849
        %v914 = vunpack.c.l.b16 %v850
        %v915 = vunpack.c.l.b16 %v851
        %v916 = vunpack.c.l.b16 %v852
        %v917 = vunpack.c.l.b16 %v853
        %v918 = vunpack.c.l.b16 %v854
        %v919 = vunpack.c.l.b16 %v855
        %v920 = vunpack.c.l.b16 %v856
        %v921 = vunpack.c.l.b16 %v857
        %v922 = vunpack.c.l.b16 %v858
        %v923 = vunpack.c.l.b16 %v859
        %v924 = vunpack.c.l.b16 %v860
        %v925 = vunpack.c.l.b16 %v861
        %v926 = vunpack.c.l.b16 %v862
        %v927 = vunpack.c.l.b16 %v863
        %v928 = vunpack.c.l.b16 %v864
        %v929 = vunpack.c.l.b16 %v865
        %v930 = vunpack.c.l.b16 %v866
        %v931 = vunpack.c.l.b16 %v867
        %v932 = vunpack.c.l.b16 %v868
        %v933 = vunpack.c.l.b16 %v869
        %v934 = vunpack.c.l.b16 %v870
        %v935 = vpack.c.b16 %v904, %v903
        %v936 = vpack.c.b16 %v906, %v905
        %v937 = vpack.c.b16 %v908, %v907
        %v938 = vpack.c.b16 %v910, %v909
        %v939 = vpack.c.b16 %v912, %v911
        %v940 = vpack.c.b16 %v914, %v913
        %v941 = vpack.c.b16 %v916, %v915
        %v942 = vpack.c.b16 %v918, %v917
        %v943 = vpack.c.b16 %v920, %v919
        %v944 = vpack.c.b16 %v922, %v921
        %v945 = vpack.c.b16 %v924, %v923
        %v946 = vpack.c.b16 %v926, %v925
        %v947 = vpack.c.b16 %v928, %v927
        %v948 = vpack.c.b16 %v930, %v929
        %v949 = vpack.c.b16 %v932, %v931
        %v950 = vpack.c.b16 %v934, %v933
        %967 = vmatprep.subr.bf16.mxu0 0
        %968 = vmatpush1.bf16.msra.mxu0 %v935
        %969 = vmatprep.subr.bf16.mxu0 0
        %970 = vmatpush1.bf16.msra.mxu0 %v936
        %971 = vmatprep.subr.bf16.mxu0 0
        %972 = vmatpush1.bf16.msra.mxu0 %v937
        %973 = vmatprep.subr.bf16.mxu0 0
        %974 = vmatpush1.bf16.msra.mxu0 %v938
        %975 = vmatprep.subr.bf16.mxu0 0
        %976 = vmatpush1.bf16.msra.mxu0 %v939
        %977 = vmatprep.subr.bf16.mxu0 0
        %978 = vmatpush1.bf16.msra.mxu0 %v940
        %979 = vmatprep.subr.bf16.mxu0 0
        %980 = vmatpush1.bf16.msra.mxu0 %v941
        %981 = vmatprep.subr.bf16.mxu0 0
        %982 = vmatpush1.bf16.msra.mxu0 %v942
        %983 = vmatprep.subr.bf16.mxu0 0
        %984 = vmatpush1.bf16.msra.mxu0 %v943
        %985 = vmatprep.subr.bf16.mxu0 0
        %986 = vmatpush1.bf16.msra.mxu0 %v944
        %987 = vmatprep.subr.bf16.mxu0 0
        %988 = vmatpush1.bf16.msra.mxu0 %v945
        %989 = vmatprep.subr.bf16.mxu0 0
        %990 = vmatpush1.bf16.msra.mxu0 %v946
        %991 = vmatprep.subr.bf16.mxu0 0
        %992 = vmatpush1.bf16.msra.mxu0 %v947
        %993 = vmatprep.subr.bf16.mxu0 0
        %994 = vmatpush1.bf16.msra.mxu0 %v948
        %995 = vmatprep.subr.bf16.mxu0 0
        %996 = vmatpush1.bf16.msra.mxu0 %v949
        %997 = vmatprep.subr.bf16.mxu0 0
        %998 = vmatpush1.bf16.msra.mxu0 %v950
        %999 = vmatprep.mubr.bf16.mxu0 %v467
        %1000 = vmatmul.mubr.bf16.gmra.mrb[0].mxu0 %v466
        %v1001 = vpop.f32.mrb[0].mxu0
        %v1002 = vadd.f32 0.0, %v1001
        %v1003 = vpop.f32.mrb[0].mxu0
        %v1004 = vpop.f32.mrb[0].mxu0
        %v1005 = vpop.f32.mrb[0].mxu0
        %1006 = vdwg.mxu0
        %v1007 = vpack.c.bf16 %v1002, %v1002
        %v1008 = vld [vmem:[#allocation7] sm:$0xff]
        %v1009 = vld [vmem:[%s3] sm:$0xff]
        %v1010 = vmul.f32 %v1008, 0.088388346
        %v1011 = vmul.f32 %v1009, 0.088388346
        %v1012 = vld [vmem:[%s371] sm:$0xff]
        %v1013 = vmul.f32 %v834, %v1008
        %1014 = vrot.lane.b32.xlu0 %v834, 64
        %v1015 = vpop.permute.xlu0 %1014
        %v1016 = vmul.f32 %v1015, %v1009
        %v1017 = vadd.f32 %v1013, %v1016
        %v1018 = vpack.c.bf16 %v1017, %v1017
        %v1019 = vmul.f32 %v665, %v1010
        %v1020 = vmul.f32 %v667, %v1010
        %1021 = vrot.lane.b32.xlu0 %v665, 64
        %v1022 = vpop.permute.xlu0 %1021
        %1023 = vrot.lane.b32.xlu0 %v667, 64
        %v1024 = vpop.permute.xlu0 %1023
        %v1025 = vmul.f32 %v1022, %v1011
        %v1026 = vmul.f32 %v1024, %v1011
        %v1027 = vadd.f32 %v1019, %v1025
        %v1028 = vadd.f32 %v1020, %v1026
        %v1029 = vpack.c.bf16 %v1028, %v1027
        %1030 = vmatprep.subr.bf16.mxu0 0
        %1031 = vmatpush1.bf16.xpose.msra.mxu0 %v1018
        %1032 = vmatprep.subr.bf16.mxu0 0
        %1033 = vmatpush1.bf16.xpose.msra.mxu0 0
        %1034 = vmatprep.subr.bf16.mxu0 0
        %1035 = vmatpush1.bf16.xpose.msra.mxu0 0
        %1036 = vmatprep.subr.bf16.mxu0 0
        %1037 = vmatpush1.bf16.xpose.msra.mxu0 0
        %1038 = vmatprep.subr.bf16.mxu0 0
        %1039 = vmatpush1.bf16.xpose.msra.mxu0 0
        %1040 = vmatprep.subr.bf16.mxu0 0
        %1041 = vmatpush1.bf16.xpose.msra.mxu0 0
        %1042 = vmatprep.subr.bf16.mxu0 0
        %1043 = vmatpush1.bf16.xpose.msra.mxu0 0
        %1044 = vmatprep.subr.bf16.mxu0 0
        %1045 = vmatpush1.bf16.xpose.msra.mxu0 0
        %1046 = vmatprep.subr.bf16.mxu0 0
        %1047 = vmatpush1.bf16.xpose.msra.mxu0 0
        %1048 = vmatprep.subr.bf16.mxu0 0
        %1049 = vmatpush1.bf16.xpose.msra.mxu0 0
        %1050 = vmatprep.subr.bf16.mxu0 0
        %1051 = vmatpush1.bf16.xpose.msra.mxu0 0
        %1052 = vmatprep.subr.bf16.mxu0 0
        %1053 = vmatpush1.bf16.xpose.msra.mxu0 0
        %1054 = vmatprep.subr.bf16.mxu0 0
        %1055 = vmatpush1.bf16.xpose.msra.mxu0 0
        %1056 = vmatprep.subr.bf16.mxu0 0
        %1057 = vmatpush1.bf16.xpose.msra.mxu0 0
        %1058 = vmatprep.subr.bf16.mxu0 0
        %1059 = vmatpush1.bf16.xpose.msra.mxu0 0
        %1060 = vmatprep.subr.bf16.mxu0 0
        %1061 = vmatpush1.bf16.xpose.msra.mxu0 0
        %1062 = vmatprep.mubr.bf16.mxu0 0
        %1063 = vmatmul.mubr.bf16.gmra.mrb[0].mxu0 %v1029
        %v1064 = vpop.f32.mrb[0].mxu0
        %v1065 = vadd.f32 %v1012, %v1064
        %v1066 = vpop.f32.mrb[0].mxu0
        %v1067 = vpop.f32.mrb[0].mxu0
        %v1068 = vadd.f32 %v1012, %v1067
        %v1069 = vpop.f32.mrb[0].mxu0
        %1070 = vdwg.mxu0
        %vm1071 = vcmask 64512
        %v1072 = vsel %vm1071, %v1065, -inf
        %1073 = vmax.xlane.f32.xlu0 %v1072
        %v1074 = vpop.xlane.xlu0 %1073
        %v1075 = vsel %vm1071, %v1068, -inf
        %1076 = vmax.xlane.f32.xlu0 %v1075
        %v1077 = vpop.xlane.xlu0 %1076
        %v1078 = vsub.f32 %v1065, %v1074
        %v1079 = vsub.f32 %v1068, %v1077
        %v1080 = vmul.f32 %v1078, 1.442695
        %v1081 = vpow.pop %v1080
        %v1082 = vmul.f32 %v1079, 1.442695
        %v1083 = vpow.pop %v1082
        %v1084 = vsel %vm1071, %v1081, 0.0
        %1085 = vadd.xlane.f32.xlu0 %v1084
        %v1086 = vpop.xlane.xlu0 %1085
        %v1087 = vsel %vm1071, %v1083, 0.0
        %1088 = vadd.xlane.f32.xlu0 %v1087
        %v1089 = vpop.xlane.xlu0 %1088
        %v1090 = vrcp.pop %v1086
        %v1091 = vrcp.pop %v1089
        %v1092 = vmul.f32 %v1081, %v1090
        %v1093 = vmul.f32 %v1083, %v1091
        %v1094 = vpack.c.bf16 %v1093, %v1092
        %v1096 = vsel %vm1071, %v1094, 0
        %vm1098 = vcmask 1043456
        %v1100 = vsel %vm1098, %v1007, 0
        %1102 = vmatprep.subr.bf16.mxu0 0
        %1103 = vmatpush1.bf16.msra.mxu0 %v1100
        %1104 = vmatprep.subr.bf16.mxu0 0
        %1105 = vmatpush1.bf16.msra.mxu0 0
        %1106 = vmatprep.subr.bf16.mxu0 0
        %1107 = vmatpush1.bf16.msra.mxu0 0
        %1108 = vmatprep.subr.bf16.mxu0 0
        %1109 = vmatpush1.bf16.msra.mxu0 0
        %1110 = vmatprep.subr.bf16.mxu0 0
        %1111 = vmatpush1.bf16.msra.mxu0 0
        %1112 = vmatprep.subr.bf16.mxu0 0
        %1113 = vmatpush1.bf16.msra.mxu0 0
        %1114 = vmatprep.subr.bf16.mxu0 0
        %1115 = vmatpush1.bf16.msra.mxu0 0
        %1116 = vmatprep.subr.bf16.mxu0 0
        %1117 = vmatpush1.bf16.msra.mxu0 0
        %1118 = vmatprep.subr.bf16.mxu0 0
        %1119 = vmatpush1.bf16.msra.mxu0 0
        %1120 = vmatprep.subr.bf16.mxu0 0
        %1121 = vmatpush1.bf16.msra.mxu0 0
        %1122 = vmatprep.subr.bf16.mxu0 0
        %1123 = vmatpush1.bf16.msra.mxu0 0
        %1124 = vmatprep.subr.bf16.mxu0 0
        %1125 = vmatpush1.bf16.msra.mxu0 0
        %1126 = vmatprep.subr.bf16.mxu0 0
        %1127 = vmatpush1.bf16.msra.mxu0 0
        %1128 = vmatprep.subr.bf16.mxu0 0
        %1129 = vmatpush1.bf16.msra.mxu0 0
        %1130 = vmatprep.subr.bf16.mxu0 0
        %1131 = vmatpush1.bf16.msra.mxu0 0
        %1132 = vmatprep.subr.bf16.mxu0 0
        %1133 = vmatpush1.bf16.msra.mxu0 0
        %1134 = vmatprep.mubr.bf16.mxu0 0
        %1135 = vmatmul.mubr.bf16.gmra.mrb[0].mxu0 %v1096
        %v1136 = vpop.f32.mrb[0].mxu0
        %v1137 = vadd.f32 0.0, %v1136
        %v1138 = vpop.f32.mrb[0].mxu0
        %v1139 = vpop.f32.mrb[0].mxu0
        %v1140 = vadd.f32 0.0, %v1139
        %v1141 = vpop.f32.mrb[0].mxu0
        %1142 = vdwg.mxu0
        %v1143 = vpack.c.bf16 %v1137, %v1137
        %v1144 = vpack.c.bf16 %v1140, %v1140
        %v1145 = vld [vmem:[#allocation13] sm:$0xff]
        %v1146 = vld [vmem:[#allocation13 + $0x8] sm:$0xff]
        %v1147 = vld [vmem:[#allocation13 + $0x10] sm:$0xff]
        %v1148 = vld [vmem:[#allocation13 + $0x18] sm:$0xff]
        %v1149 = vld [vmem:[#allocation13 + $0x20] sm:$0xff]
        %v1150 = vld [vmem:[#allocation13 + $0x28] sm:$0xff]
        %v1151 = vld [vmem:[#allocation13 + $0x30] sm:$0xff]
        %v1152 = vld [vmem:[#allocation13 + $0x38] sm:$0xff]
        %v1153 = vld [vmem:[#allocation13 + $0x40] sm:$0xff]
        %v1154 = vld [vmem:[#allocation13 + $0x48] sm:$0xff]
        %v1155 = vld [vmem:[#allocation13 + $0x50] sm:$0xff]
        %v1156 = vld [vmem:[#allocation13 + $0x58] sm:$0xff]
        %v1157 = vld [vmem:[#allocation13 + $0x60] sm:$0xff]
        %v1158 = vld [vmem:[#allocation13 + $0x68] sm:$0xff]
        %v1159 = vld [vmem:[#allocation13 + $0x70] sm:$0xff]
        %v1160 = vld [vmem:[#allocation13 + $0x78] sm:$0xff]
        %v1161 = vld [vmem:[#allocation13 + $0x80] sm:$0xff]
        %v1162 = vld [vmem:[#allocation13 + $0x88] sm:$0xff]
        %v1163 = vld [vmem:[#allocation13 + $0x90] sm:$0xff]
        %v1164 = vld [vmem:[#allocation13 + $0x98] sm:$0xff]
        %v1165 = vld [vmem:[#allocation13 + $0xa0] sm:$0xff]
        %v1166 = vld [vmem:[#allocation13 + $0xa8] sm:$0xff]
        %v1167 = vld [vmem:[#allocation13 + $0xb0] sm:$0xff]
        %v1168 = vld [vmem:[#allocation13 + $0xb8] sm:$0xff]
        %v1169 = vld [vmem:[#allocation13 + $0xc0] sm:$0xff]
        %v1170 = vld [vmem:[#allocation13 + $0xc8] sm:$0xff]
        %v1171 = vld [vmem:[#allocation13 + $0xd0] sm:$0xff]
        %v1172 = vld [vmem:[#allocation13 + $0xd8] sm:$0xff]
        %v1173 = vld [vmem:[#allocation13 + $0xe0] sm:$0xff]
        %v1174 = vld [vmem:[#allocation13 + $0xe8] sm:$0xff]
        %v1175 = vld [vmem:[#allocation13 + $0xf0] sm:$0xff]
        %v1176 = vld [vmem:[#allocation13 + $0xf8] sm:$0xff]
        %v1209 = vunpack.c.l.b16 %v1145
        %v1210 = vunpack.c.h.b16 %v1145
        %v1211 = vunpack.c.l.b16 %v1146
        %v1212 = vunpack.c.h.b16 %v1146
        %v1213 = vunpack.c.l.b16 %v1147
        %v1214 = vunpack.c.h.b16 %v1147
        %v1215 = vunpack.c.l.b16 %v1148
        %v1216 = vunpack.c.h.b16 %v1148
        %v1217 = vunpack.c.l.b16 %v1149
        %v1218 = vunpack.c.h.b16 %v1149
        %v1219 = vunpack.c.l.b16 %v1150
        %v1220 = vunpack.c.h.b16 %v1150
        %v1221 = vunpack.c.l.b16 %v1151
        %v1222 = vunpack.c.h.b16 %v1151
        %v1223 = vunpack.c.l.b16 %v1152
        %v1224 = vunpack.c.h.b16 %v1152
        %v1225 = vunpack.c.l.b16 %v1153
        %v1226 = vunpack.c.h.b16 %v1153
        %v1227 = vunpack.c.l.b16 %v1154
        %v1228 = vunpack.c.h.b16 %v1154
        %v1229 = vunpack.c.l.b16 %v1155
        %v1230 = vunpack.c.h.b16 %v1155
        %v1231 = vunpack.c.l.b16 %v1156
        %v1232 = vunpack.c.h.b16 %v1156
        %v1233 = vunpack.c.l.b16 %v1157
        %v1234 = vunpack.c.h.b16 %v1157
        %v1235 = vunpack.c.l.b16 %v1158
        %v1236 = vunpack.c.h.b16 %v1158
        %v1237 = vunpack.c.l.b16 %v1159
        %v1238 = vunpack.c.h.b16 %v1159
        %v1239 = vunpack.c.l.b16 %v1160
        %v1240 = vunpack.c.h.b16 %v1160
        %v1241 = vunpack.c.l.b16 %v1161
        %v1242 = vunpack.c.h.b16 %v1161
        %v1243 = vunpack.c.l.b16 %v1162
        %v1244 = vunpack.c.h.b16 %v1162
        %v1245 = vunpack.c.l.b16 %v1163
        %v1246 = vunpack.c.h.b16 %v1163
        %v1247 = vunpack.c.l.b16 %v1164
        %v1248 = vunpack.c.h.b16 %v1164
        %v1249 = vunpack.c.l.b16 %v1165
        %v1250 = vunpack.c.h.b16 %v1165
        %v1251 = vunpack.c.l.b16 %v1166
        %v1252 = vunpack.c.h.b16 %v1166
        %v1253 = vunpack.c.l.b16 %v1167
        %v1254 = vunpack.c.h.b16 %v1167
        %v1255 = vunpack.c.l.b16 %v1168
        %v1256 = vunpack.c.h.b16 %v1168
        %v1257 = vunpack.c.l.b16 %v1169
        %v1258 = vunpack.c.h.b16 %v1169
        %v1259 = vunpack.c.l.b16 %v1170
        %v1260 = vunpack.c.h.b16 %v1170
        %v1261 = vunpack.c.l.b16 %v1171
        %v1262 = vunpack.c.h.b16 %v1171
        %v1263 = vunpack.c.l.b16 %v1172
        %v1264 = vunpack.c.h.b16 %v1172
        %v1265 = vunpack.c.l.b16 %v1173
        %v1266 = vunpack.c.h.b16 %v1173
        %v1267 = vunpack.c.l.b16 %v1174
        %v1268 = vunpack.c.h.b16 %v1174
        %v1269 = vunpack.c.l.b16 %v1175
        %v1270 = vunpack.c.h.b16 %v1175
        %v1271 = vunpack.c.l.b16 %v1176
        %v1272 = vunpack.c.h.b16 %v1176
        %v1273 = vpack.c.b16 %v1211, %v1209
        %v1274 = vpack.c.b16 %v1212, %v1210
        %v1275 = vpack.c.b16 %v1215, %v1213
        %v1276 = vpack.c.b16 %v1216, %v1214
        %v1277 = vpack.c.b16 %v1219, %v1217
        %v1278 = vpack.c.b16 %v1220, %v1218
        %v1279 = vpack.c.b16 %v1223, %v1221
        %v1280 = vpack.c.b16 %v1224, %v1222
        %v1281 = vpack.c.b16 %v1227, %v1225
        %v1282 = vpack.c.b16 %v1228, %v1226
        %v1283 = vpack.c.b16 %v1231, %v1229
        %v1284 = vpack.c.b16 %v1232, %v1230
        %v1285 = vpack.c.b16 %v1235, %v1233
        %v1286 = vpack.c.b16 %v1236, %v1234
        %v1287 = vpack.c.b16 %v1239, %v1237
        %v1288 = vpack.c.b16 %v1240, %v1238
        %v1289 = vpack.c.b16 %v1243, %v1241
        %v1290 = vpack.c.b16 %v1244, %v1242
        %v1291 = vpack.c.b16 %v1247, %v1245
        %v1292 = vpack.c.b16 %v1248, %v1246
        %v1293 = vpack.c.b16 %v1251, %v1249
        %v1294 = vpack.c.b16 %v1252, %v1250
        %v1295 = vpack.c.b16 %v1255, %v1253
        %v1296 = vpack.c.b16 %v1256, %v1254
        %v1297 = vpack.c.b16 %v1259, %v1257
        %v1298 = vpack.c.b16 %v1260, %v1258
        %v1299 = vpack.c.b16 %v1263, %v1261
        %v1300 = vpack.c.b16 %v1264, %v1262
        %v1301 = vpack.c.b16 %v1267, %v1265
        %v1302 = vpack.c.b16 %v1268, %v1266
        %v1303 = vpack.c.b16 %v1271, %v1269
        %v1304 = vpack.c.b16 %v1272, %v1270
        %1337 = vmatprep.subr.bf16.mxu0 %v1274
        %1338 = vmatpush1.bf16.msra.mxu0 %v1273
        %1339 = vmatprep.subr.bf16.mxu0 %v1276
        %1340 = vmatpush1.bf16.msra.mxu0 %v1275
        %1341 = vmatprep.subr.bf16.mxu0 %v1278
        %1342 = vmatpush1.bf16.msra.mxu0 %v1277
        %1343 = vmatprep.subr.bf16.mxu0 %v1280
        %1344 = vmatpush1.bf16.msra.mxu0 %v1279
        %1345 = vmatprep.subr.bf16.mxu0 %v1282
        %1346 = vmatpush1.bf16.msra.mxu0 %v1281
        %1347 = vmatprep.subr.bf16.mxu0 %v1284
        %1348 = vmatpush1.bf16.msra.mxu0 %v1283
        %1349 = vmatprep.subr.bf16.mxu0 %v1286
        %1350 = vmatpush1.bf16.msra.mxu0 %v1285
        %1351 = vmatprep.subr.bf16.mxu0 %v1288
        %1352 = vmatpush1.bf16.msra.mxu0 %v1287
        %1353 = vmatprep.subr.bf16.mxu0 %v1290
        %1354 = vmatpush1.bf16.msra.mxu0 %v1289
        %1355 = vmatprep.subr.bf16.mxu0 %v1292
        %1356 = vmatpush1.bf16.msra.mxu0 %v1291
        %1357 = vmatprep.subr.bf16.mxu0 %v1294
        %1358 = vmatpush1.bf16.msra.mxu0 %v1293
        %1359 = vmatprep.subr.bf16.mxu0 %v1296
        %1360 = vmatpush1.bf16.msra.mxu0 %v1295
        %1361 = vmatprep.subr.bf16.mxu0 %v1298
        %1362 = vmatpush1.bf16.msra.mxu0 %v1297
        %1363 = vmatprep.subr.bf16.mxu0 %v1300
        %1364 = vmatpush1.bf16.msra.mxu0 %v1299
        %1365 = vmatprep.subr.bf16.mxu0 %v1302
        %1366 = vmatpush1.bf16.msra.mxu0 %v1301
        %1367 = vmatprep.subr.bf16.mxu0 %v1304
        %1368 = vmatpush1.bf16.msra.mxu0 %v1303
        %1369 = vmatprep.mubr.bf16.mxu0 %v1144
        %1370 = vmatmul.mubr.bf16.gmra.mrb[0].mxu0 %v1143
        %v1371 = vpop.f32.mrb[0].mxu0
        %v1372 = vadd.f32 0.0, %v1371
        %v1373 = vpop.f32.mrb[0].mxu0
        %v1374 = vadd.f32 0.0, %v1373
        %v1375 = vpop.f32.mrb[0].mxu0
        %v1376 = vpop.f32.mrb[0].mxu0
        %1377 = vdwg.mxu0
        %1378 = vst [vmem:[%s428] sm:$0xff] %v1372
        %1379 = vst [vmem:[%s428 + $0x8] sm:$0xff] %v1374
        %s1380 = sand.u32 %s216, 1
        %s1381 = scalar_lea.sflag [#allocation4], %s1380
        %s1382 = sand.u32 %s216, 1
        %s1383 = smul.addr %s1382, 16
        %s1384 = scalar_lea.vmem [#allocation14], %s1383
        // Predicated region
        $region81: #{tpu_custom_call.1} parent=51 // pred_check
          %p1385 = pneg %p226
        $region82: #{tpu_custom_call.1} parent=51 // pred_check_branch
          %1387 = sbr.rel (%p1385) target = $region84
        $region83: #{tpu_custom_call.1} parent=51 // pred_region
          %s1389 = ssub.s32 256, 256
          %1390 = vsyncadd %s1381, %s1389
          %s1391 = smul.addr %s30, 2
          %s1392 = smul.addr %s1391, 128
          %s1393 = scalar_lea.hbm %s8, %s1392
          %s1395 = sshll.u32 %s1384, 4
          %s1396 = int_to_ptr.vmem [resolvable:$true] %s1395
          %1398 = dma.vmem_to_hbm [thread:$0]  %s1396, 256, %s1393, %s1381
        $region84: #{tpu_custom_call.1} parent=51 // pred_fallthru
          _
      $region52: #{tpu_custom_call.1} parent=5 // pred_fallthru
        _
      %p1399 = scmp.le.s32.totalorder 2, %s25
      // Predicated region
      $region85: #{tpu_custom_call.1} parent=5 // pred_check
        %p1400 = pneg %p1399
      $region86: #{tpu_custom_call.1} parent=5 // pred_check_branch
        %1402 = sbr.rel (%p1400) target = $region88
      $region87: #{tpu_custom_call.1} parent=5 // pred_region
        %s1403 = ssub.s32 %s25, 2
        // Predicated region
        $region89: #{tpu_custom_call.1} parent=87 // pred_check
          %p1404 = pneg %p232
        $region90: #{tpu_custom_call.1} parent=87 // pred_check_branch
          %1406 = sbr.rel (%p1404) target = $region92
        $region91: #{tpu_custom_call.1} parent=87 // pred_region
          %s1407 = sand.u32 %s217, 1
          %s1408 = scalar_lea.sflag [#allocation4], %s1407
          %s1409 = sand.u32 %s217, 1
          %s1410 = smul.addr %s1409, 16
          %s1411 = scalar_lea.vmem [#allocation14], %s1410
          %1412 = dma.done %s1408, 256
        $region92: #{tpu_custom_call.1} parent=87 // pred_fallthru
          _
      $region88: #{tpu_custom_call.1} parent=5 // pred_fallthru
        _
    $region6: #{tpu_custom_call.1} parent=1 // loop_footer
      %s29 = sadd.s32 1, %s25
    $region7: #{tpu_custom_call.1} parent=1 // loop_footer_branch
      %24 = sbr.rel target = $region3
    $region8: #{tpu_custom_call.1} parent=1 // loop_exit
      _
    %1413 = vsyncpa [#allocation3], 1
    %s1414 = scalar_lea.sflag [#allocation3], 1
    %1415 = vsyncpa %s1414, 1
    %1416 = vsyncpa [#allocation6], 1
    %s1417 = scalar_lea.sflag [#allocation6], 1
    %1418 = vsyncpa %s1417, 1
    %1419 = vsyncpa [#allocation9], 1
    %1420 = vsyncpa [#allocation12], 1
    %1421 = vsyncpa [#allocation4], 1
    %s1422 = scalar_lea.sflag [#allocation4], 1
    %1423 = vsyncpa %s1422, 1

</llo_original>
